<compile_context>
chip_gen: v6e
topology: v6e:2x2x1
jax: 0.10.0
libtpu: 0.0.40
codegen_flags: <defaults>
</compile_context>

<pallas_src>
import functools
import math

import jax
import jax.numpy as jnp
from jax.experimental import pallas as pl
from jax.experimental.pallas import tpu as pltpu


# ------------------------------ kernel ------------------------------------- #

def _mha_kernel(*refs, h, d_k, scale, dropout_rate, training, has_mask,
                block_b, S, D):
    if has_mask:
        (seed_ref, q_ref, k_ref, v_ref, m_ref,
         wq_ref, bq_ref, wk_ref, bk_ref, wv_ref, bv_ref,
         wo_ref, bo_ref, o_ref) = refs
    else:
        (seed_ref, q_ref, k_ref, v_ref,
         wq_ref, bq_ref, wk_ref, bk_ref, wv_ref, bv_ref,
         wo_ref, bo_ref, o_ref) = refs
        m_ref = None

    M = block_b * S  # MXU rows for the projection / output matmuls

    # Flatten the per-step batch block -> tall bf16 matrices for the MXU.
    xq = q_ref[...].reshape(M, D).astype(jnp.bfloat16)
    xk = k_ref[...].reshape(M, D).astype(jnp.bfloat16)
    xv = v_ref[...].reshape(M, D).astype(jnp.bfloat16)

    # Input projections: bf16 operands, f32 accumulation, f32 bias add.
    Q = jnp.dot(xq, wq_ref[...], preferred_element_type=jnp.float32) + bq_ref[...]
    K = jnp.dot(xk, wk_ref[...], preferred_element_type=jnp.float32) + bk_ref[...]
    V = jnp.dot(xv, wv_ref[...], preferred_element_type=jnp.float32) + bv_ref[...]

    # Scale Q once (equivalent to dividing the scores by sqrt(d_k)).
    Qb = (Q * scale).astype(jnp.bfloat16).reshape(block_b, S, D)
    Kb = K.astype(jnp.bfloat16).reshape(block_b, S, D)
    Vb = V.astype(jnp.bfloat16).reshape(block_b, S, D)

    if has_mask:
        # Hoisted out of the per-head unrolled loop (done once per grid step).
        mask_add = jnp.where(m_ref[...] == 0,
                             jnp.float32(-1e9), jnp.float32(0.0))

    use_dropout = training and dropout_rate > 0.0
    if use_dropout:
        # Collision-free seed mix across (seed, grid step); one draw for all heads.
        pltpu.prng_seed(seed_ref[0] * pl.num_programs(0) + pl.program_id(0))
        thresh = jnp.uint32(min(int(dropout_rate * 4294967296.0), 4294967295))
        inv_keep = jnp.float32(1.0 / (1.0 - dropout_rate))
        all_bits = pltpu.bitcast(pltpu.prng_random_bits((M, h * S)), jnp.uint32)

    wo_all = wo_ref[...]                      # bf16 [D, D], loaded once
    acc = jnp.zeros((M, D), jnp.float32)      # fused head-concat + out-projection

    # Heads are d_k-wide lane slices of the projected activations
    # (matches view(..., h, d_k).transpose(1, 2)).  Static unroll over h.
    for i in range(h):
        lo = i * d_k
        Qi = Qb[:, :, lo:lo + d_k]
        Ki = Kb[:, :, lo:lo + d_k]
        Vi = Vb[:, :, lo:lo + d_k]

        s = jnp.einsum("bqd,bkd->bqk", Qi, Ki,
                       preferred_element_type=jnp.float32)
        if has_mask:
            s = s + mask_add

        # Numerically stable softmax; denominator via EUP approx reciprocal.
        s = s - jnp.max(s, axis=-1, keepdims=True)
        e = jnp.exp(s)
        p = e * pl.reciprocal(jnp.sum(e, axis=-1, keepdims=True), approx=True)

        if use_dropout:
            bits = all_bits[:, i * S:(i + 1) * S].reshape(block_b, S, S)
            p = jnp.where(bits >= thresh, p * inv_keep, 0.0)

        ctx = jnp.einsum("bqk,bkd->bqd", p.astype(jnp.bfloat16), Vi,
                         preferred_element_type=jnp.float32)

        # Fold output projection into the head loop: [M, d_k] x [d_k, D]
        # accumulated in f32 -> no lane concat, 128-lane-dense MXU outputs.
        acc = acc + jnp.dot(ctx.astype(jnp.bfloat16).reshape(M, d_k),
                            wo_all[lo:lo + d_k, :],
                            preferred_element_type=jnp.float32)

    out = acc + bo_ref[...]
    o_ref[...] = out.reshape(block_b, S, D).astype(o_ref.dtype)


# ------------------------------ wrapper ------------------------------------ #

def mha_forward(query, key, value, params, mask=None, *, h,
                dropout_rate=0.1, training=False, seed=0, block_b=None):
    """query/key/value: [B, S, D]. mask (optional): [B, S, S] (0 = masked)."""
    B, S, D = query.shape
    assert D % h == 0
    d_k = D // h
    scale = 1.0 / math.sqrt(d_k)
    has_mask = mask is not None

    # Batch several sequences per grid step (projection M = block_b*S) while
    # keeping >= 2 grid steps when possible so both v7x TensorCores get work.
    if block_b is None:
        block_b = 1
        min_steps = min(2, B)
        for cand in range(B, 0, -1):
            if B % cand == 0 and B // cand >= min_steps:
                block_b = cand
                break
    assert B % block_b == 0
    grid = (B // block_b,)

    kernel = functools.partial(
        _mha_kernel, h=h, d_k=d_k, scale=scale,
        dropout_rate=dropout_rate, training=training, has_mask=has_mask,
        block_b=block_b, S=S, D=D)

    xspec = pl.BlockSpec((block_b, S, D), lambda b, seed: (b, 0, 0))
    wspec = pl.BlockSpec((D, D), lambda b, seed: (0, 0))   # VMEM-resident weights
    bspec = pl.BlockSpec((1, D), lambda b, seed: (0, 0))   # VMEM-resident biases

    bf16 = jnp.bfloat16
    in_specs = [xspec, xspec, xspec]
    inputs = [query, key, value]
    if has_mask:
        in_specs.append(pl.BlockSpec((block_b, S, S), lambda b, seed: (b, 0, 0)))
        inputs.append(mask)
    in_specs += [wspec, bspec, wspec, bspec, wspec, bspec, wspec, bspec]
    inputs += [params["wq"].astype(bf16), params["bq"].reshape(1, D),
               params["wk"].astype(bf16), params["bk"].reshape(1, D),
               params["wv"].astype(bf16), params["bv"].reshape(1, D),
               params["wo"].astype(bf16), params["bo"].reshape(1, D)]

    seed_arr = jnp.array([seed], dtype=jnp.int32)

    return pl.pallas_call(
        kernel,
        out_shape=jax.ShapeDtypeStruct((B, S, D), query.dtype),
        grid_spec=pltpu.PrefetchScalarGridSpec(
            num_scalar_prefetch=1,
            grid=grid,
            in_specs=in_specs,
            out_specs=xspec,
        ),
        compiler_params=pltpu.CompilerParams(
            dimension_semantics=("parallel",)),
    )(seed_arr, *inputs)


# ------------------------------ reference ----------------------------------- #

def ref_mha(q, k, v, params, h, mask=None):
    B, S, D = q.shape
    d_k = D // h

    def lin(x, w, b):
        return jnp.einsum("bsd,df->bsf", x, w) + b

    Q = lin(q, params["wq"], params["bq"]).reshape(B, S, h, d_k).transpose(0, 2, 1, 3)
    K = lin(k, params["wk"], params["bk"]).reshape(B, S, h, d_k).transpose(0, 2, 1, 3)
    V = lin(v, params["wv"], params["bv"]).reshape(B, S, h, d_k).transpose(0, 2, 1, 3)
    s = jnp.einsum("bhqd,bhkd->bhqk", Q, K) / math.sqrt(d_k)
    if mask is not None:
        s = jnp.where(mask[:, None] == 0, -1e9, s)
    p = jax.nn.softmax(s, axis=-1)
    ctx = jnp.einsum("bhqk,bhkd->bhqd", p, V).transpose(0, 2, 1, 3).reshape(B, S, D)
    return jnp.einsum("bsd,df->bsf", ctx, params["wo"]) + params["bo"]


# ------------------------------ main ---------------------------------------- #

if __name__ == "__main__":
    key = jax.random.PRNGKey(0)
    ks = jax.random.split(key, 11)

    B, S, D, H = 2, 16, 128, 4  # batch, seq, d_model, heads (d_k = 32)

    q = jax.random.normal(ks[0], (B, S, D), jnp.float32)
    k = jax.random.normal(ks[1], (B, S, D), jnp.float32)
    v = jax.random.normal(ks[2], (B, S, D), jnp.float32)

    def init_linear(kw, kb, din, dout):
        bound = 1.0 / math.sqrt(din)  # torch.nn.Linear default init range
        w = jax.random.uniform(kw, (din, dout), jnp.float32, -bound, bound)
        b = jax.random.uniform(kb, (dout,), jnp.float32, -bound, bound)
        return w, b

    wq, bq = init_linear(ks[3], ks[4], D, D)
    wk, bk = init_linear(ks[5], ks[6], D, D)
    wv, bv = init_linear(ks[7], ks[8], D, D)
    wo, bo = init_linear(ks[9], ks[10], D, D)
    params = {"wq": wq, "bq": bq, "wk": wk, "bk": bk,
              "wv": wv, "bv": bv, "wo": wo, "bo": bo}

    # Eval mode (dropout = identity), no mask — matches the module defaults.
    out = mha_forward(q, k, v, params, mask=None, h=H,
                      dropout_rate=0.1, training=False)
    out = jax.block_until_ready(out)

    ref = ref_mha(q, k, v, params, H, mask=None)
    err = float(jnp.max(jnp.abs(out - ref)))
    assert out.shape == (B, S, D)
    # bf16 MXU operands with f32 accumulation -> allow bf16-level tolerance.
    assert jnp.allclose(out, ref, atol=3e-2, rtol=3e-2), f"max err {err}"
    print("KERNEL_OK")
</pallas_src>

<mosaic_0001>
module attributes {stable_mosaic.version = 11 : i64} {
  func.func @_mha_kernel(%arg0: i32, %arg1: memref<1xi32, #tpu.memory_space<smem>>, %arg2: memref<1x16x128xf32, #tpu.memory_space<vmem>>, %arg3: memref<1x16x128xf32, #tpu.memory_space<vmem>>, %arg4: memref<1x16x128xf32, #tpu.memory_space<vmem>>, %arg5: memref<128x128xbf16, #tpu.memory_space<vmem>>, %arg6: memref<1x128xf32, #tpu.memory_space<vmem>>, %arg7: memref<128x128xbf16, #tpu.memory_space<vmem>>, %arg8: memref<1x128xf32, #tpu.memory_space<vmem>>, %arg9: memref<128x128xbf16, #tpu.memory_space<vmem>>, %arg10: memref<1x128xf32, #tpu.memory_space<vmem>>, %arg11: memref<128x128xbf16, #tpu.memory_space<vmem>>, %arg12: memref<1x128xf32, #tpu.memory_space<vmem>>, %arg13: memref<1x16x128xf32, #tpu.memory_space<vmem>>) attributes {dimension_semantics = [#tpu.dimension_semantics<parallel>], iteration_bounds = array<i64: 2>, scalar_prefetch = 1 : i64, scratch_operands = 0 : i64, tpu.core_type = #tpu.core_type<tc>, window_params = [{transform_indices = @transform_0, window_bounds = array<i64: 1, 16, 128>}, {transform_indices = @transform_1, window_bounds = array<i64: 1, 16, 128>}, {transform_indices = @transform_2, window_bounds = array<i64: 1, 16, 128>}, {pipeline_mode = #tpu.pipeline_mode<synchronous>, transform_indices = @transform_3, window_bounds = array<i64: 128, 128>}, {pipeline_mode = #tpu.pipeline_mode<synchronous>, transform_indices = @transform_4, window_bounds = array<i64: 1, 128>}, {pipeline_mode = #tpu.pipeline_mode<synchronous>, transform_indices = @transform_5, window_bounds = array<i64: 128, 128>}, {pipeline_mode = #tpu.pipeline_mode<synchronous>, transform_indices = @transform_6, window_bounds = array<i64: 1, 128>}, {pipeline_mode = #tpu.pipeline_mode<synchronous>, transform_indices = @transform_7, window_bounds = array<i64: 128, 128>}, {pipeline_mode = #tpu.pipeline_mode<synchronous>, transform_indices = @transform_8, window_bounds = array<i64: 1, 128>}, {pipeline_mode = #tpu.pipeline_mode<synchronous>, transform_indices = @transform_9, window_bounds = array<i64: 128, 128>}, {pipeline_mode = #tpu.pipeline_mode<synchronous>, transform_indices = @transform_10, window_bounds = array<i64: 1, 128>}, {transform_indices = @transform_11, window_bounds = array<i64: 1, 16, 128>}]} {
    %c0 = arith.constant 0 : index
    %c0_0 = arith.constant 0 : index
    %c0_1 = arith.constant 0 : index
    %0 = vector.load %arg2[%c0, %c0_0, %c0_1] : memref<1x16x128xf32, #tpu.memory_space<vmem>>, vector<1x16x128xf32>
    %1 = vector.shape_cast %0 : vector<1x16x128xf32> to vector<16x128xf32>
    %2 = arith.truncf %1 : vector<16x128xf32> to vector<16x128xbf16>
    %c0_2 = arith.constant 0 : index
    %c0_3 = arith.constant 0 : index
    %c0_4 = arith.constant 0 : index
    %3 = vector.load %arg3[%c0_2, %c0_3, %c0_4] : memref<1x16x128xf32, #tpu.memory_space<vmem>>, vector<1x16x128xf32>
    %4 = vector.shape_cast %3 : vector<1x16x128xf32> to vector<16x128xf32>
    %5 = arith.truncf %4 : vector<16x128xf32> to vector<16x128xbf16>
    %c0_5 = arith.constant 0 : index
    %c0_6 = arith.constant 0 : index
    %c0_7 = arith.constant 0 : index
    %6 = vector.load %arg4[%c0_5, %c0_6, %c0_7] : memref<1x16x128xf32, #tpu.memory_space<vmem>>, vector<1x16x128xf32>
    %7 = vector.shape_cast %6 : vector<1x16x128xf32> to vector<16x128xf32>
    %8 = arith.truncf %7 : vector<16x128xf32> to vector<16x128xbf16>
    %c0_8 = arith.constant 0 : index
    %c0_9 = arith.constant 0 : index
    %9 = vector.load %arg5[%c0_8, %c0_9] : memref<128x128xbf16, #tpu.memory_space<vmem>>, vector<128x128xbf16>
    %cst = arith.constant dense<0.000000e+00> : vector<16x128xf32>
    %10 = tpu.matmul %2, %9, %cst {dimension_numbers = #tpu.dot_dimension_numbers<[1], [0], [0], [1], [0, 0, 1, 1], [], []>} : vector<16x128xbf16>, vector<128x128xbf16>, vector<16x128xf32> -> vector<16x128xf32>
    %c0_10 = arith.constant 0 : index
    %c0_11 = arith.constant 0 : index
    %11 = vector.load %arg6[%c0_10, %c0_11] : memref<1x128xf32, #tpu.memory_space<vmem>>, vector<1x128xf32>
    %12 = vector.broadcast %11 : vector<1x128xf32> to vector<16x128xf32>
    %13 = arith.addf %10, %12 : vector<16x128xf32>
    %c0_12 = arith.constant 0 : index
    %c0_13 = arith.constant 0 : index
    %14 = vector.load %arg7[%c0_12, %c0_13] : memref<128x128xbf16, #tpu.memory_space<vmem>>, vector<128x128xbf16>
    %cst_14 = arith.constant dense<0.000000e+00> : vector<16x128xf32>
    %15 = tpu.matmul %5, %14, %cst_14 {dimension_numbers = #tpu.dot_dimension_numbers<[1], [0], [0], [1], [0, 0, 1, 1], [], []>} : vector<16x128xbf16>, vector<128x128xbf16>, vector<16x128xf32> -> vector<16x128xf32>
    %c0_15 = arith.constant 0 : index
    %c0_16 = arith.constant 0 : index
    %16 = vector.load %arg8[%c0_15, %c0_16] : memref<1x128xf32, #tpu.memory_space<vmem>>, vector<1x128xf32>
    %17 = vector.broadcast %16 : vector<1x128xf32> to vector<16x128xf32>
    %18 = arith.addf %15, %17 : vector<16x128xf32>
    %c0_17 = arith.constant 0 : index
    %c0_18 = arith.constant 0 : index
    %19 = vector.load %arg9[%c0_17, %c0_18] : memref<128x128xbf16, #tpu.memory_space<vmem>>, vector<128x128xbf16>
    %cst_19 = arith.constant dense<0.000000e+00> : vector<16x128xf32>
    %20 = tpu.matmul %8, %19, %cst_19 {dimension_numbers = #tpu.dot_dimension_numbers<[1], [0], [0], [1], [0, 0, 1, 1], [], []>} : vector<16x128xbf16>, vector<128x128xbf16>, vector<16x128xf32> -> vector<16x128xf32>
    %c0_20 = arith.constant 0 : index
    %c0_21 = arith.constant 0 : index
    %21 = vector.load %arg10[%c0_20, %c0_21] : memref<1x128xf32, #tpu.memory_space<vmem>>, vector<1x128xf32>
    %22 = vector.broadcast %21 : vector<1x128xf32> to vector<16x128xf32>
    %23 = arith.addf %20, %22 : vector<16x128xf32>
    %cst_22 = arith.constant 0.176776692 : f32
    %24 = vector.broadcast %cst_22 : f32 to vector<16x128xf32>
    %25 = arith.mulf %13, %24 : vector<16x128xf32>
    %26 = arith.truncf %25 : vector<16x128xf32> to vector<16x128xbf16>
    %27 = vector.shape_cast %26 : vector<16x128xbf16> to vector<1x16x128xbf16>
    %28 = arith.truncf %18 : vector<16x128xf32> to vector<16x128xbf16>
    %29 = vector.shape_cast %28 : vector<16x128xbf16> to vector<1x16x128xbf16>
    %30 = arith.truncf %23 : vector<16x128xf32> to vector<16x128xbf16>
    %31 = vector.shape_cast %30 : vector<16x128xbf16> to vector<1x16x128xbf16>
    %c0_23 = arith.constant 0 : index
    %c0_24 = arith.constant 0 : index
    %32 = vector.load %arg11[%c0_23, %c0_24] : memref<128x128xbf16, #tpu.memory_space<vmem>>, vector<128x128xbf16>
    %cst_25 = arith.constant 0.000000e+00 : f32
    %33 = vector.broadcast %cst_25 : f32 to vector<16x128xf32>
    %34 = vector.extract_strided_slice %27 {offsets = [0, 0, 0], sizes = [1, 16, 32], strides = [1, 1, 1]} : vector<1x16x128xbf16> to vector<1x16x32xbf16>
    %35 = vector.extract_strided_slice %29 {offsets = [0, 0, 0], sizes = [1, 16, 32], strides = [1, 1, 1]} : vector<1x16x128xbf16> to vector<1x16x32xbf16>
    %36 = vector.extract_strided_slice %31 {offsets = [0, 0, 0], sizes = [1, 16, 32], strides = [1, 1, 1]} : vector<1x16x128xbf16> to vector<1x16x32xbf16>
    "tpu.trace_start"() <{level = 10 : i32, message = "bqd,bkd->bqk"}> : () -> ()
    %cst_26 = arith.constant dense<0.000000e+00> : vector<1x16x16xf32>
    %37 = tpu.matmul %34, %35, %cst_26 {dimension_numbers = #tpu.dot_dimension_numbers<[2], [2], [1], [1], [0, 0, 0, 1, 1, 1], [0], [0]>} : vector<1x16x32xbf16>, vector<1x16x32xbf16>, vector<1x16x16xf32> -> vector<1x16x16xf32>
    "tpu.trace_stop"() : () -> ()
    %cst_27 = arith.constant dense<0xFF800000> : vector<1x16xf32>
    %38 = vector.multi_reduction <maximumf>, %37, %cst_27 [2] : vector<1x16x16xf32> to vector<1x16xf32>
    %39 = vector.shape_cast %38 : vector<1x16xf32> to vector<1x16x1xf32>
    %40 = vector.broadcast %39 : vector<1x16x1xf32> to vector<1x16x16xf32>
    %41 = arith.subf %37, %40 : vector<1x16x16xf32>
    %42 = math.exp %41 : vector<1x16x16xf32>
    %cst_28 = arith.constant dense<0.000000e+00> : vector<1x16xf32>
    %43 = vector.multi_reduction <add>, %42, %cst_28 [2] : vector<1x16x16xf32> to vector<1x16xf32>
    %44 = vector.shape_cast %43 : vector<1x16xf32> to vector<1x16x1xf32>
    %45 = tpu.reciprocal %44 {approx = true} : vector<1x16x1xf32> -> vector<1x16x1xf32>
    %46 = vector.broadcast %45 : vector<1x16x1xf32> to vector<1x16x16xf32>
    %47 = arith.mulf %42, %46 : vector<1x16x16xf32>
    %48 = arith.truncf %47 : vector<1x16x16xf32> to vector<1x16x16xbf16>
    "tpu.trace_start"() <{level = 10 : i32, message = "bqk,bkd->bqd"}> : () -> ()
    %cst_29 = arith.constant dense<0.000000e+00> : vector<1x16x32xf32>
    %49 = tpu.matmul %48, %36, %cst_29 {dimension_numbers = #tpu.dot_dimension_numbers<[2], [1], [1], [2], [0, 0, 0, 1, 1, 2], [0], [0]>} : vector<1x16x16xbf16>, vector<1x16x32xbf16>, vector<1x16x32xf32> -> vector<1x16x32xf32>
    "tpu.trace_stop"() : () -> ()
    %50 = arith.truncf %49 : vector<1x16x32xf32> to vector<1x16x32xbf16>
    %51 = vector.shape_cast %50 : vector<1x16x32xbf16> to vector<16x32xbf16>
    %52 = vector.extract_strided_slice %32 {offsets = [0, 0], sizes = [32, 128], strides = [1, 1]} : vector<128x128xbf16> to vector<32x128xbf16>
    %cst_30 = arith.constant dense<0.000000e+00> : vector<16x128xf32>
    %53 = tpu.matmul %51, %52, %cst_30 {dimension_numbers = #tpu.dot_dimension_numbers<[1], [0], [0], [1], [0, 0, 1, 1], [], []>} : vector<16x32xbf16>, vector<32x128xbf16>, vector<16x128xf32> -> vector<16x128xf32>
    %54 = arith.addf %33, %53 : vector<16x128xf32>
    %55 = vector.extract_strided_slice %27 {offsets = [0, 0, 32], sizes = [1, 16, 32], strides = [1, 1, 1]} : vector<1x16x128xbf16> to vector<1x16x32xbf16>
    %56 = vector.extract_strided_slice %29 {offsets = [0, 0, 32], sizes = [1, 16, 32], strides = [1, 1, 1]} : vector<1x16x128xbf16> to vector<1x16x32xbf16>
    %57 = vector.extract_strided_slice %31 {offsets = [0, 0, 32], sizes = [1, 16, 32], strides = [1, 1, 1]} : vector<1x16x128xbf16> to vector<1x16x32xbf16>
    "tpu.trace_start"() <{level = 10 : i32, message = "bqd,bkd->bqk"}> : () -> ()
    %cst_31 = arith.constant dense<0.000000e+00> : vector<1x16x16xf32>
    %58 = tpu.matmul %55, %56, %cst_31 {dimension_numbers = #tpu.dot_dimension_numbers<[2], [2], [1], [1], [0, 0, 0, 1, 1, 1], [0], [0]>} : vector<1x16x32xbf16>, vector<1x16x32xbf16>, vector<1x16x16xf32> -> vector<1x16x16xf32>
    "tpu.trace_stop"() : () -> ()
    %cst_32 = arith.constant dense<0xFF800000> : vector<1x16xf32>
    %59 = vector.multi_reduction <maximumf>, %58, %cst_32 [2] : vector<1x16x16xf32> to vector<1x16xf32>
    %60 = vector.shape_cast %59 : vector<1x16xf32> to vector<1x16x1xf32>
    %61 = vector.broadcast %60 : vector<1x16x1xf32> to vector<1x16x16xf32>
    %62 = arith.subf %58, %61 : vector<1x16x16xf32>
    %63 = math.exp %62 : vector<1x16x16xf32>
    %cst_33 = arith.constant dense<0.000000e+00> : vector<1x16xf32>
    %64 = vector.multi_reduction <add>, %63, %cst_33 [2] : vector<1x16x16xf32> to vector<1x16xf32>
    %65 = vector.shape_cast %64 : vector<1x16xf32> to vector<1x16x1xf32>
    %66 = tpu.reciprocal %65 {approx = true} : vector<1x16x1xf32> -> vector<1x16x1xf32>
    %67 = vector.broadcast %66 : vector<1x16x1xf32> to vector<1x16x16xf32>
    %68 = arith.mulf %63, %67 : vector<1x16x16xf32>
    %69 = arith.truncf %68 : vector<1x16x16xf32> to vector<1x16x16xbf16>
    "tpu.trace_start"() <{level = 10 : i32, message = "bqk,bkd->bqd"}> : () -> ()
    %cst_34 = arith.constant dense<0.000000e+00> : vector<1x16x32xf32>
    %70 = tpu.matmul %69, %57, %cst_34 {dimension_numbers = #tpu.dot_dimension_numbers<[2], [1], [1], [2], [0, 0, 0, 1, 1, 2], [0], [0]>} : vector<1x16x16xbf16>, vector<1x16x32xbf16>, vector<1x16x32xf32> -> vector<1x16x32xf32>
    "tpu.trace_stop"() : () -> ()
    %71 = arith.truncf %70 : vector<1x16x32xf32> to vector<1x16x32xbf16>
    %72 = vector.shape_cast %71 : vector<1x16x32xbf16> to vector<16x32xbf16>
    %73 = vector.extract_strided_slice %32 {offsets = [32, 0], sizes = [32, 128], strides = [1, 1]} : vector<128x128xbf16> to vector<32x128xbf16>
    %cst_35 = arith.constant dense<0.000000e+00> : vector<16x128xf32>
    %74 = tpu.matmul %72, %73, %cst_35 {dimension_numbers = #tpu.dot_dimension_numbers<[1], [0], [0], [1], [0, 0, 1, 1], [], []>} : vector<16x32xbf16>, vector<32x128xbf16>, vector<16x128xf32> -> vector<16x128xf32>
    %75 = arith.addf %54, %74 : vector<16x128xf32>
    %76 = vector.extract_strided_slice %27 {offsets = [0, 0, 64], sizes = [1, 16, 32], strides = [1, 1, 1]} : vector<1x16x128xbf16> to vector<1x16x32xbf16>
    %77 = vector.extract_strided_slice %29 {offsets = [0, 0, 64], sizes = [1, 16, 32], strides = [1, 1, 1]} : vector<1x16x128xbf16> to vector<1x16x32xbf16>
    %78 = vector.extract_strided_slice %31 {offsets = [0, 0, 64], sizes = [1, 16, 32], strides = [1, 1, 1]} : vector<1x16x128xbf16> to vector<1x16x32xbf16>
    "tpu.trace_start"() <{level = 10 : i32, message = "bqd,bkd->bqk"}> : () -> ()
    %cst_36 = arith.constant dense<0.000000e+00> : vector<1x16x16xf32>
    %79 = tpu.matmul %76, %77, %cst_36 {dimension_numbers = #tpu.dot_dimension_numbers<[2], [2], [1], [1], [0, 0, 0, 1, 1, 1], [0], [0]>} : vector<1x16x32xbf16>, vector<1x16x32xbf16>, vector<1x16x16xf32> -> vector<1x16x16xf32>
    "tpu.trace_stop"() : () -> ()
    %cst_37 = arith.constant dense<0xFF800000> : vector<1x16xf32>
    %80 = vector.multi_reduction <maximumf>, %79, %cst_37 [2] : vector<1x16x16xf32> to vector<1x16xf32>
    %81 = vector.shape_cast %80 : vector<1x16xf32> to vector<1x16x1xf32>
    %82 = vector.broadcast %81 : vector<1x16x1xf32> to vector<1x16x16xf32>
    %83 = arith.subf %79, %82 : vector<1x16x16xf32>
    %84 = math.exp %83 : vector<1x16x16xf32>
    %cst_38 = arith.constant dense<0.000000e+00> : vector<1x16xf32>
    %85 = vector.multi_reduction <add>, %84, %cst_38 [2] : vector<1x16x16xf32> to vector<1x16xf32>
    %86 = vector.shape_cast %85 : vector<1x16xf32> to vector<1x16x1xf32>
    %87 = tpu.reciprocal %86 {approx = true} : vector<1x16x1xf32> -> vector<1x16x1xf32>
    %88 = vector.broadcast %87 : vector<1x16x1xf32> to vector<1x16x16xf32>
    %89 = arith.mulf %84, %88 : vector<1x16x16xf32>
    %90 = arith.truncf %89 : vector<1x16x16xf32> to vector<1x16x16xbf16>
    "tpu.trace_start"() <{level = 10 : i32, message = "bqk,bkd->bqd"}> : () -> ()
    %cst_39 = arith.constant dense<0.000000e+00> : vector<1x16x32xf32>
    %91 = tpu.matmul %90, %78, %cst_39 {dimension_numbers = #tpu.dot_dimension_numbers<[2], [1], [1], [2], [0, 0, 0, 1, 1, 2], [0], [0]>} : vector<1x16x16xbf16>, vector<1x16x32xbf16>, vector<1x16x32xf32> -> vector<1x16x32xf32>
    "tpu.trace_stop"() : () -> ()
    %92 = arith.truncf %91 : vector<1x16x32xf32> to vector<1x16x32xbf16>
    %93 = vector.shape_cast %92 : vector<1x16x32xbf16> to vector<16x32xbf16>
    %94 = vector.extract_strided_slice %32 {offsets = [64, 0], sizes = [32, 128], strides = [1, 1]} : vector<128x128xbf16> to vector<32x128xbf16>
    %cst_40 = arith.constant dense<0.000000e+00> : vector<16x128xf32>
    %95 = tpu.matmul %93, %94, %cst_40 {dimension_numbers = #tpu.dot_dimension_numbers<[1], [0], [0], [1], [0, 0, 1, 1], [], []>} : vector<16x32xbf16>, vector<32x128xbf16>, vector<16x128xf32> -> vector<16x128xf32>
    %96 = arith.addf %75, %95 : vector<16x128xf32>
    %97 = vector.extract_strided_slice %27 {offsets = [0, 0, 96], sizes = [1, 16, 32], strides = [1, 1, 1]} : vector<1x16x128xbf16> to vector<1x16x32xbf16>
    %98 = vector.extract_strided_slice %29 {offsets = [0, 0, 96], sizes = [1, 16, 32], strides = [1, 1, 1]} : vector<1x16x128xbf16> to vector<1x16x32xbf16>
    %99 = vector.extract_strided_slice %31 {offsets = [0, 0, 96], sizes = [1, 16, 32], strides = [1, 1, 1]} : vector<1x16x128xbf16> to vector<1x16x32xbf16>
    "tpu.trace_start"() <{level = 10 : i32, message = "bqd,bkd->bqk"}> : () -> ()
    %cst_41 = arith.constant dense<0.000000e+00> : vector<1x16x16xf32>
    %100 = tpu.matmul %97, %98, %cst_41 {dimension_numbers = #tpu.dot_dimension_numbers<[2], [2], [1], [1], [0, 0, 0, 1, 1, 1], [0], [0]>} : vector<1x16x32xbf16>, vector<1x16x32xbf16>, vector<1x16x16xf32> -> vector<1x16x16xf32>
    "tpu.trace_stop"() : () -> ()
    %cst_42 = arith.constant dense<0xFF800000> : vector<1x16xf32>
    %101 = vector.multi_reduction <maximumf>, %100, %cst_42 [2] : vector<1x16x16xf32> to vector<1x16xf32>
    %102 = vector.shape_cast %101 : vector<1x16xf32> to vector<1x16x1xf32>
    %103 = vector.broadcast %102 : vector<1x16x1xf32> to vector<1x16x16xf32>
    %104 = arith.subf %100, %103 : vector<1x16x16xf32>
    %105 = math.exp %104 : vector<1x16x16xf32>
    %cst_43 = arith.constant dense<0.000000e+00> : vector<1x16xf32>
    %106 = vector.multi_reduction <add>, %105, %cst_43 [2] : vector<1x16x16xf32> to vector<1x16xf32>
    %107 = vector.shape_cast %106 : vector<1x16xf32> to vector<1x16x1xf32>
    %108 = tpu.reciprocal %107 {approx = true} : vector<1x16x1xf32> -> vector<1x16x1xf32>
    %109 = vector.broadcast %108 : vector<1x16x1xf32> to vector<1x16x16xf32>
    %110 = arith.mulf %105, %109 : vector<1x16x16xf32>
    %111 = arith.truncf %110 : vector<1x16x16xf32> to vector<1x16x16xbf16>
    "tpu.trace_start"() <{level = 10 : i32, message = "bqk,bkd->bqd"}> : () -> ()
    %cst_44 = arith.constant dense<0.000000e+00> : vector<1x16x32xf32>
    %112 = tpu.matmul %111, %99, %cst_44 {dimension_numbers = #tpu.dot_dimension_numbers<[2], [1], [1], [2], [0, 0, 0, 1, 1, 2], [0], [0]>} : vector<1x16x16xbf16>, vector<1x16x32xbf16>, vector<1x16x32xf32> -> vector<1x16x32xf32>
    "tpu.trace_stop"() : () -> ()
    %113 = arith.truncf %112 : vector<1x16x32xf32> to vector<1x16x32xbf16>
    %114 = vector.shape_cast %113 : vector<1x16x32xbf16> to vector<16x32xbf16>
    %115 = vector.extract_strided_slice %32 {offsets = [96, 0], sizes = [32, 128], strides = [1, 1]} : vector<128x128xbf16> to vector<32x128xbf16>
    %cst_45 = arith.constant dense<0.000000e+00> : vector<16x128xf32>
    %116 = tpu.matmul %114, %115, %cst_45 {dimension_numbers = #tpu.dot_dimension_numbers<[1], [0], [0], [1], [0, 0, 1, 1], [], []>} : vector<16x32xbf16>, vector<32x128xbf16>, vector<16x128xf32> -> vector<16x128xf32>
    %117 = arith.addf %96, %116 : vector<16x128xf32>
    %c0_46 = arith.constant 0 : index
    %c0_47 = arith.constant 0 : index
    %118 = vector.load %arg12[%c0_46, %c0_47] : memref<1x128xf32, #tpu.memory_space<vmem>>, vector<1x128xf32>
    %119 = vector.broadcast %118 : vector<1x128xf32> to vector<16x128xf32>
    %120 = arith.addf %117, %119 : vector<16x128xf32>
    %121 = vector.shape_cast %120 : vector<16x128xf32> to vector<1x16x128xf32>
    %c0_48 = arith.constant 0 : index
    %c0_49 = arith.constant 0 : index
    %c0_50 = arith.constant 0 : index
    %122 = vector.load %arg13[%c0_48, %c0_49, %c0_50] : memref<1x16x128xf32, #tpu.memory_space<vmem>>, vector<1x16x128xf32>
    tpu.vector_store %arg13[%c0_48, %c0_49, %c0_50], %121 {strides = array<i32>} : memref<1x16x128xf32, #tpu.memory_space<vmem>>, vector<1x16x128xf32>,
    return
  }
  func.func @transform_0(%arg0: i32, %arg1: memref<1xi32, #tpu.memory_space<smem>>) -> (i32, i32, i32) {
    %c0_i32 = arith.constant 0 : i32
    %c0_i32_0 = arith.constant 0 : i32
    %c0_i32_1 = arith.constant 0 : i32
    return %arg0, %c0_i32, %c0_i32_0 : i32, i32, i32
  }
  func.func @transform_1(%arg0: i32, %arg1: memref<1xi32, #tpu.memory_space<smem>>) -> (i32, i32, i32) {
    %c0_i32 = arith.constant 0 : i32
    %c0_i32_0 = arith.constant 0 : i32
    %c0_i32_1 = arith.constant 0 : i32
    return %arg0, %c0_i32, %c0_i32_0 : i32, i32, i32
  }
  func.func @transform_2(%arg0: i32, %arg1: memref<1xi32, #tpu.memory_space<smem>>) -> (i32, i32, i32) {
    %c0_i32 = arith.constant 0 : i32
    %c0_i32_0 = arith.constant 0 : i32
    %c0_i32_1 = arith.constant 0 : i32
    return %arg0, %c0_i32, %c0_i32_0 : i32, i32, i32
  }
  func.func @transform_3(%arg0: i32, %arg1: memref<1xi32, #tpu.memory_space<smem>>) -> (i32, i32) {
    %c0_i32 = arith.constant 0 : i32
    %c0_i32_0 = arith.constant 0 : i32
    %c0_i32_1 = arith.constant 0 : i32
    return %c0_i32, %c0_i32_0 : i32, i32
  }
  func.func @transform_4(%arg0: i32, %arg1: memref<1xi32, #tpu.memory_space<smem>>) -> (i32, i32) {
    %c0_i32 = arith.constant 0 : i32
    %c0_i32_0 = arith.constant 0 : i32
    %c0_i32_1 = arith.constant 0 : i32
    return %c0_i32, %c0_i32_0 : i32, i32
  }
  func.func @transform_5(%arg0: i32, %arg1: memref<1xi32, #tpu.memory_space<smem>>) -> (i32, i32) {
    %c0_i32 = arith.constant 0 : i32
    %c0_i32_0 = arith.constant 0 : i32
    %c0_i32_1 = arith.constant 0 : i32
    return %c0_i32, %c0_i32_0 : i32, i32
  }
  func.func @transform_6(%arg0: i32, %arg1: memref<1xi32, #tpu.memory_space<smem>>) -> (i32, i32) {
    %c0_i32 = arith.constant 0 : i32
    %c0_i32_0 = arith.constant 0 : i32
    %c0_i32_1 = arith.constant 0 : i32
    return %c0_i32, %c0_i32_0 : i32, i32
  }
  func.func @transform_7(%arg0: i32, %arg1: memref<1xi32, #tpu.memory_space<smem>>) -> (i32, i32) {
    %c0_i32 = arith.constant 0 : i32
    %c0_i32_0 = arith.constant 0 : i32
    %c0_i32_1 = arith.constant 0 : i32
    return %c0_i32, %c0_i32_0 : i32, i32
  }
  func.func @transform_8(%arg0: i32, %arg1: memref<1xi32, #tpu.memory_space<smem>>) -> (i32, i32) {
    %c0_i32 = arith.constant 0 : i32
    %c0_i32_0 = arith.constant 0 : i32
    %c0_i32_1 = arith.constant 0 : i32
    return %c0_i32, %c0_i32_0 : i32, i32
  }
  func.func @transform_9(%arg0: i32, %arg1: memref<1xi32, #tpu.memory_space<smem>>) -> (i32, i32) {
    %c0_i32 = arith.constant 0 : i32
    %c0_i32_0 = arith.constant 0 : i32
    %c0_i32_1 = arith.constant 0 : i32
    return %c0_i32, %c0_i32_0 : i32, i32
  }
  func.func @transform_10(%arg0: i32, %arg1: memref<1xi32, #tpu.memory_space<smem>>) -> (i32, i32) {
    %c0_i32 = arith.constant 0 : i32
    %c0_i32_0 = arith.constant 0 : i32
    %c0_i32_1 = arith.constant 0 : i32
    return %c0_i32, %c0_i32_0 : i32, i32
  }
  func.func @transform_11(%arg0: i32, %arg1: memref<1xi32, #tpu.memory_space<smem>>) -> (i32, i32, i32) {
    %c0_i32 = arith.constant 0 : i32
    %c0_i32_0 = arith.constant 0 : i32
    %c0_i32_1 = arith.constant 0 : i32
    return %arg0, %c0_i32, %c0_i32_0 : i32, i32, i32
  }
}

</mosaic_0001>

<llo_original>
// kernel: tpu_custom_call.1
$region0: #{tpu_custom_call.1}
  #allocation0 [shape = 'u32[]', space=smem, size = 0x4, offset = 0x4, fixed_abs, tag = 'smem constant byte address 0x4 - core index']
  #allocation1 [shape = 'u32[144,128]{1,0:T(1,128)}', space=vmem, size = 0x12000, scoped, tag = 'internal scratch']
  #allocation2 [shape = 's32[1]{0}', space=sflag, size = 0x4, scoped, tag = 'scoped memory for tpu_custom_call.1']
  #allocation3 [shape = 's32[1]{0:T(128)S(6)}', space=smem, size = 0x200, scoped, tag = 'prefetched SMEM operand 0']
  %s0 = inlined_call_operand.<no memory space> [shape: s32[1], index: 0, kind: input, shape index: {}]
  %s1 = inlined_call_operand.hbm [shape: f32[2,16,128], index: 1, kind: input, shape index: {}]
  %s2 = inlined_call_operand.hbm [shape: f32[2,16,128], index: 2, kind: input, shape index: {}]
  %s3 = inlined_call_operand.hbm [shape: f32[2,16,128], index: 3, kind: input, shape index: {}]
  %s4 = inlined_call_operand.hbm [shape: bf16[128,128], index: 4, kind: input, shape index: {}]
  %s5 = inlined_call_operand.vmem [shape: f32[1,128], index: 5, kind: input, shape index: {}]
  %s6 = inlined_call_operand.hbm [shape: bf16[128,128], index: 6, kind: input, shape index: {}]
  %s7 = inlined_call_operand.vmem [shape: f32[1,128], index: 7, kind: input, shape index: {}]
  %s8 = inlined_call_operand.hbm [shape: bf16[128,128], index: 8, kind: input, shape index: {}]
  %s9 = inlined_call_operand.vmem [shape: f32[1,128], index: 9, kind: input, shape index: {}]
  %s10 = inlined_call_operand.hbm [shape: bf16[128,128], index: 10, kind: input, shape index: {}]
  %s11 = inlined_call_operand.vmem [shape: f32[1,128], index: 11, kind: input, shape index: {}]
  %s12 = inlined_call_operand.hbm [shape: f32[2,16,128], index: 12, kind: output, shape index: {}]
  %s13 = sld [smem:[#allocation0]]
  $region105: #{tpu_custom_call.1} parent=0
    _
  %s15 = ssub.s32 1, %s13
  %s16 = scalar_select 0, %s15, %s13
  %17 = sst [smem:[#allocation3]] %s0
  $region1: #{tpu_custom_call.1} parent=0
    #allocation4 [shape = 'u8[16384]{0}', space=vmem, size = 0x4000, scoped, tag = 'input window, operand 1']
    #allocation5 [shape = 's32[2]{0}', space=sflag, size = 0x8, scoped, tag = 'scoped memory for tpu_custom_call.1']
    #allocation6 [shape = 's32[2]{0}', space=sflag, size = 0x8, scoped, tag = 'scoped memory for tpu_custom_call.1']
    #allocation7 [shape = 'u8[16384]{0}', space=vmem, size = 0x4000, scoped, tag = 'input window, operand 2']
    #allocation8 [shape = 's32[2]{0}', space=sflag, size = 0x8, scoped, tag = 'scoped memory for tpu_custom_call.1']
    #allocation9 [shape = 'u8[16384]{0}', space=vmem, size = 0x4000, scoped, tag = 'input window, operand 3']
    #allocation10 [shape = 'u8[32768]{0}', space=vmem, size = 0x8000, scoped, tag = 'input window, operand 4, single buffered']
    #allocation11 [shape = 's32[1]{0}', space=sflag, size = 0x4, scoped, tag = 'scoped memory for tpu_custom_call.1']
    #allocation12 [shape = 'u8[32768]{0}', space=vmem, size = 0x8000, scoped, tag = 'input window, operand 6, single buffered']
    #allocation13 [shape = 'u8[32768]{0}', space=vmem, size = 0x8000, scoped, tag = 'input window, operand 8, single buffered']
    #allocation14 [shape = 's32[1]{0}', space=sflag, size = 0x4, scoped, tag = 'scoped memory for tpu_custom_call.1']
    #allocation15 [shape = 'u8[32768]{0}', space=vmem, size = 0x8000, scoped, tag = 'input window, operand 10, single buffered']
    #allocation16 [shape = 'u8[16384]{0}', space=vmem, size = 0x4000, scoped, tag = 'output window, operand 0']
    %18 = vsyncpa [#allocation5], 0
    %s19 = scalar_lea.sflag [#allocation5], 1
    %20 = vsyncpa %s19, 0
    %21 = vsyncpa [#allocation8], 0
    %s22 = scalar_lea.sflag [#allocation8], 1
    %23 = vsyncpa %s22, 0
    %24 = vsyncpa [#allocation11], 0
    %25 = vsyncpa [#allocation14], 0
    %26 = vsyncpa [#allocation6], 0
    %s27 = scalar_lea.sflag [#allocation6], 1
    %28 = vsyncpa %s27, 0
    loop: start=0, step=1, limit=4
    $region2: #{tpu_custom_call.1} parent=1 // loop_pre_header
      _
    $region3: #{tpu_custom_call.1} parent=1 // loop_header
      %s30 = sphi 0, %s34
      %p31 = scmp.ge.s32.totalorder %s30, 4
      %s40 = sphi 0, %s42
      %s43 = sphi 0, %s40
      %s44 = sphi 0, %s43
      %s60 = sphi 0, %s44
      %s66 = sphi 0, %s68
      %s69 = sphi 0, %s66
      %s70 = sphi 0, %s69
      %s86 = sphi 0, %s70
      %s92 = sphi 0, %s94
      %s95 = sphi 0, %s92
      %s96 = sphi 0, %s95
      %s112 = sphi 0, %s96
      %s116 = sphi 0, %s116
      %s118 = sphi 0, %s116
      %s119 = sphi 0, %s118
      %s133 = sphi 0, %s119
      %s137 = sphi 0, %s137
      %s139 = sphi 0, %s137
      %s140 = sphi 0, %s139
      %s154 = sphi 0, %s140
      %s158 = sphi 0, %s158
      %s160 = sphi 0, %s158
      %s161 = sphi 0, %s160
      %s175 = sphi 0, %s161
      %s179 = sphi 0, %s179
      %s181 = sphi 0, %s179
      %s182 = sphi 0, %s181
      %s196 = sphi 0, %s182
      %s200 = sphi 0, %s200
      %s202 = sphi 0, %s200
      %s203 = sphi 0, %s202
      %s217 = sphi 0, %s203
      %s221 = sphi 0, %s221
      %s223 = sphi 0, %s221
      %s224 = sphi 0, %s223
      %s238 = sphi 0, %s224
      %s242 = sphi 0, %s242
      %s244 = sphi 0, %s242
      %s245 = sphi 0, %s244
      %s259 = sphi 0, %s245
      %s263 = sphi 0, %s263
      %s265 = sphi 0, %s263
      %s266 = sphi 0, %s265
      %s280 = sphi 0, %s266
      %s286 = sphi 0, %s288
      %s289 = sphi 0, %s286
      %s290 = sphi 0, %s289
      %s306 = sphi 0, %s290
    $region4: #{tpu_custom_call.1} parent=1 // loop_header_branch
      %33 = sbr.rel (%p31) target = $region8
    $region5: #{tpu_custom_call.1} parent=1 // loop_body
      %s35 = ssub.s32 %s30, 1
      %s36 = ssub.s32 %s30, 2
      %s37 = sadd.s32 %s30, 1
      %s38 = ssub.s32 %s30, %s37
      %p39 = scmp.eq.s32.totalorder %s38, 0
      %s41 = sadd.s32 %s40, 1
      %s42 = scalar_select %p39, %s40, %s41
      %p45 = pneg %p39
      %p46 = scmp.eq.s32.totalorder %s30, 1
      %p47 = por %p45, %p46
      %p48 = scmp.ne.s32.totalorder %s40, %s43
      %p49 = scmp.eq.s32.totalorder %s30, 0
      %p50 = por %p48, %p49
      %p51 = scmp.ne.s32.totalorder %s40, %s43
      %p52 = scmp.eq.s32.totalorder %s35, 1
      %p53 = por %p51, %p52
      %p54 = scmp.ne.s32.totalorder %s43, %s44
      %p55 = scmp.eq.s32.totalorder %s35, 0
      %p56 = por %p54, %p55
      %p57 = scmp.ne.s32.totalorder %s43, %s44
      %p58 = scmp.eq.s32.totalorder %s36, 1
      %p59 = por %p57, %p58
      %p61 = scmp.ne.s32.totalorder %s44, %s60
      %p62 = scmp.eq.s32.totalorder %s36, 0
      %p63 = por %p61, %p62
      %s64 = ssub.s32 %s30, %s37
      %p65 = scmp.eq.s32.totalorder %s64, 0
      %s67 = sadd.s32 %s66, 1
      %s68 = scalar_select %p65, %s66, %s67
      %p71 = pneg %p65
      %p72 = scmp.eq.s32.totalorder %s30, 1
      %p73 = por %p71, %p72
      %p74 = scmp.ne.s32.totalorder %s66, %s69
      %p75 = scmp.eq.s32.totalorder %s30, 0
      %p76 = por %p74, %p75
      %p77 = scmp.ne.s32.totalorder %s66, %s69
      %p78 = scmp.eq.s32.totalorder %s35, 1
      %p79 = por %p77, %p78
      %p80 = scmp.ne.s32.totalorder %s69, %s70
      %p81 = scmp.eq.s32.totalorder %s35, 0
      %p82 = por %p80, %p81
      %p83 = scmp.ne.s32.totalorder %s69, %s70
      %p84 = scmp.eq.s32.totalorder %s36, 1
      %p85 = por %p83, %p84
      %p87 = scmp.ne.s32.totalorder %s70, %s86
      %p88 = scmp.eq.s32.totalorder %s36, 0
      %p89 = por %p87, %p88
      %s90 = ssub.s32 %s30, %s37
      %p91 = scmp.eq.s32.totalorder %s90, 0
      %s93 = sadd.s32 %s92, 1
      %s94 = scalar_select %p91, %s92, %s93
      %p97 = pneg %p91
      %p98 = scmp.eq.s32.totalorder %s30, 1
      %p99 = por %p97, %p98
      %p100 = scmp.ne.s32.totalorder %s92, %s95
      %p101 = scmp.eq.s32.totalorder %s30, 0
      %p102 = por %p100, %p101
      %p103 = scmp.ne.s32.totalorder %s92, %s95
      %p104 = scmp.eq.s32.totalorder %s35, 1
      %p105 = por %p103, %p104
      %p106 = scmp.ne.s32.totalorder %s95, %s96
      %p107 = scmp.eq.s32.totalorder %s35, 0
      %p108 = por %p106, %p107
      %p109 = scmp.ne.s32.totalorder %s95, %s96
      %p110 = scmp.eq.s32.totalorder %s36, 1
      %p111 = por %p109, %p110
      %p113 = scmp.ne.s32.totalorder %s96, %s112
      %p114 = scmp.eq.s32.totalorder %s36, 0
      %p115 = por %p113, %p114
      %s117 = sadd.s32 %s116, 1
      %p120 = scmp.eq.s32.totalorder %s30, 1
      %p121 = scmp.ne.s32.totalorder %s116, %s118
      %p122 = scmp.eq.s32.totalorder %s30, 0
      %p123 = por %p121, %p122
      %p124 = scmp.ne.s32.totalorder %s116, %s118
      %p125 = scmp.eq.s32.totalorder %s35, 1
      %p126 = por %p124, %p125
      %p127 = scmp.ne.s32.totalorder %s118, %s119
      %p128 = scmp.eq.s32.totalorder %s35, 0
      %p129 = por %p127, %p128
      %p130 = scmp.ne.s32.totalorder %s118, %s119
      %p131 = scmp.eq.s32.totalorder %s36, 1
      %p132 = por %p130, %p131
      %p134 = scmp.ne.s32.totalorder %s119, %s133
      %p135 = scmp.eq.s32.totalorder %s36, 0
      %p136 = por %p134, %p135
      %s138 = sadd.s32 %s137, 1
      %p141 = scmp.eq.s32.totalorder %s30, 1
      %p142 = scmp.ne.s32.totalorder %s137, %s139
      %p143 = scmp.eq.s32.totalorder %s30, 0
      %p144 = por %p142, %p143
      %p145 = scmp.ne.s32.totalorder %s137, %s139
      %p146 = scmp.eq.s32.totalorder %s35, 1
      %p147 = por %p145, %p146
      %p148 = scmp.ne.s32.totalorder %s139, %s140
      %p149 = scmp.eq.s32.totalorder %s35, 0
      %p150 = por %p148, %p149
      %p151 = scmp.ne.s32.totalorder %s139, %s140
      %p152 = scmp.eq.s32.totalorder %s36, 1
      %p153 = por %p151, %p152
      %p155 = scmp.ne.s32.totalorder %s140, %s154
      %p156 = scmp.eq.s32.totalorder %s36, 0
      %p157 = por %p155, %p156
      %s159 = sadd.s32 %s158, 1
      %p162 = scmp.eq.s32.totalorder %s30, 1
      %p163 = scmp.ne.s32.totalorder %s158, %s160
      %p164 = scmp.eq.s32.totalorder %s30, 0
      %p165 = por %p163, %p164
      %p166 = scmp.ne.s32.totalorder %s158, %s160
      %p167 = scmp.eq.s32.totalorder %s35, 1
      %p168 = por %p166, %p167
      %p169 = scmp.ne.s32.totalorder %s160, %s161
      %p170 = scmp.eq.s32.totalorder %s35, 0
      %p171 = por %p169, %p170
      %p172 = scmp.ne.s32.totalorder %s160, %s161
      %p173 = scmp.eq.s32.totalorder %s36, 1
      %p174 = por %p172, %p173
      %p176 = scmp.ne.s32.totalorder %s161, %s175
      %p177 = scmp.eq.s32.totalorder %s36, 0
      %p178 = por %p176, %p177
      %s180 = sadd.s32 %s179, 1
      %p183 = scmp.eq.s32.totalorder %s30, 1
      %p184 = scmp.ne.s32.totalorder %s179, %s181
      %p185 = scmp.eq.s32.totalorder %s30, 0
      %p186 = por %p184, %p185
      %p187 = scmp.ne.s32.totalorder %s179, %s181
      %p188 = scmp.eq.s32.totalorder %s35, 1
      %p189 = por %p187, %p188
      %p190 = scmp.ne.s32.totalorder %s181, %s182
      %p191 = scmp.eq.s32.totalorder %s35, 0
      %p192 = por %p190, %p191
      %p193 = scmp.ne.s32.totalorder %s181, %s182
      %p194 = scmp.eq.s32.totalorder %s36, 1
      %p195 = por %p193, %p194
      %p197 = scmp.ne.s32.totalorder %s182, %s196
      %p198 = scmp.eq.s32.totalorder %s36, 0
      %p199 = por %p197, %p198
      %s201 = sadd.s32 %s200, 1
      %p204 = scmp.eq.s32.totalorder %s30, 1
      %p205 = scmp.ne.s32.totalorder %s200, %s202
      %p206 = scmp.eq.s32.totalorder %s30, 0
      %p207 = por %p205, %p206
      %p208 = scmp.ne.s32.totalorder %s200, %s202
      %p209 = scmp.eq.s32.totalorder %s35, 1
      %p210 = por %p208, %p209
      %p211 = scmp.ne.s32.totalorder %s202, %s203
      %p212 = scmp.eq.s32.totalorder %s35, 0
      %p213 = por %p211, %p212
      %p214 = scmp.ne.s32.totalorder %s202, %s203
      %p215 = scmp.eq.s32.totalorder %s36, 1
      %p216 = por %p214, %p215
      %p218 = scmp.ne.s32.totalorder %s203, %s217
      %p219 = scmp.eq.s32.totalorder %s36, 0
      %p220 = por %p218, %p219
      %s222 = sadd.s32 %s221, 1
      %p225 = scmp.eq.s32.totalorder %s30, 1
      %p226 = scmp.ne.s32.totalorder %s221, %s223
      %p227 = scmp.eq.s32.totalorder %s30, 0
      %p228 = por %p226, %p227
      %p229 = scmp.ne.s32.totalorder %s221, %s223
      %p230 = scmp.eq.s32.totalorder %s35, 1
      %p231 = por %p229, %p230
      %p232 = scmp.ne.s32.totalorder %s223, %s224
      %p233 = scmp.eq.s32.totalorder %s35, 0
      %p234 = por %p232, %p233
      %p235 = scmp.ne.s32.totalorder %s223, %s224
      %p236 = scmp.eq.s32.totalorder %s36, 1
      %p237 = por %p235, %p236
      %p239 = scmp.ne.s32.totalorder %s224, %s238
      %p240 = scmp.eq.s32.totalorder %s36, 0
      %p241 = por %p239, %p240
      %s243 = sadd.s32 %s242, 1
      %p246 = scmp.eq.s32.totalorder %s30, 1
      %p247 = scmp.ne.s32.totalorder %s242, %s244
      %p248 = scmp.eq.s32.totalorder %s30, 0
      %p249 = por %p247, %p248
      %p250 = scmp.ne.s32.totalorder %s242, %s244
      %p251 = scmp.eq.s32.totalorder %s35, 1
      %p252 = por %p250, %p251
      %p253 = scmp.ne.s32.totalorder %s244, %s245
      %p254 = scmp.eq.s32.totalorder %s35, 0
      %p255 = por %p253, %p254
      %p256 = scmp.ne.s32.totalorder %s244, %s245
      %p257 = scmp.eq.s32.totalorder %s36, 1
      %p258 = por %p256, %p257
      %p260 = scmp.ne.s32.totalorder %s245, %s259
      %p261 = scmp.eq.s32.totalorder %s36, 0
      %p262 = por %p260, %p261
      %s264 = sadd.s32 %s263, 1
      %p267 = scmp.eq.s32.totalorder %s30, 1
      %p268 = scmp.ne.s32.totalorder %s263, %s265
      %p269 = scmp.eq.s32.totalorder %s30, 0
      %p270 = por %p268, %p269
      %p271 = scmp.ne.s32.totalorder %s263, %s265
      %p272 = scmp.eq.s32.totalorder %s35, 1
      %p273 = por %p271, %p272
      %p274 = scmp.ne.s32.totalorder %s265, %s266
      %p275 = scmp.eq.s32.totalorder %s35, 0
      %p276 = por %p274, %p275
      %p277 = scmp.ne.s32.totalorder %s265, %s266
      %p278 = scmp.eq.s32.totalorder %s36, 1
      %p279 = por %p277, %p278
      %p281 = scmp.ne.s32.totalorder %s266, %s280
      %p282 = scmp.eq.s32.totalorder %s36, 0
      %p283 = por %p281, %p282
      %s284 = ssub.s32 %s30, %s37
      %p285 = scmp.eq.s32.totalorder %s284, 0
      %s287 = sadd.s32 %s286, 1
      %s288 = scalar_select %p285, %s286, %s287
      %p291 = pneg %p285
      %p292 = scmp.eq.s32.totalorder %s30, 1
      %p293 = por %p291, %p292
      %p294 = scmp.ne.s32.totalorder %s286, %s289
      %p295 = scmp.eq.s32.totalorder %s30, 0
      %p296 = por %p294, %p295
      %p297 = scmp.ne.s32.totalorder %s286, %s289
      %p298 = scmp.eq.s32.totalorder %s35, 1
      %p299 = por %p297, %p298
      %p300 = scmp.ne.s32.totalorder %s289, %s290
      %p301 = scmp.eq.s32.totalorder %s35, 0
      %p302 = por %p300, %p301
      %p303 = scmp.ne.s32.totalorder %s289, %s290
      %p304 = scmp.eq.s32.totalorder %s36, 1
      %p305 = por %p303, %p304
      %p307 = scmp.ne.s32.totalorder %s290, %s306
      %p308 = scmp.eq.s32.totalorder %s36, 0
      %p309 = por %p307, %p308
      %p310 = scmp.le.s32.totalorder 1, %s30
      %p311 = scmp.lt.s32.totalorder %s30, 3
      %p312 = pnand %p310, %p311
      %p313 = pneg %p312
      // Predicated region
      $region9: #{tpu_custom_call.1} parent=5 // pred_check
        _
      $region10: #{tpu_custom_call.1} parent=5 // pred_check_branch
        %315 = sbr.rel (%p312) target = $region12
      $region11: #{tpu_custom_call.1} parent=5 // pred_region
        %s316 = ssub.s32 %s30, 1
        // Predicated region
        $region13: #{tpu_custom_call.1} parent=11 // pred_check
          %p317 = pneg %p129
        $region14: #{tpu_custom_call.1} parent=11 // pred_check_branch
          %319 = sbr.rel (%p317) target = $region16
        $region15: #{tpu_custom_call.1} parent=11 // pred_region
          %s321 = ssub.s32 1024, 1024
          %322 = vsyncadd [#allocation11], %s321
          %s323 = sshll.u32 [#allocation10], 4
          %s324 = int_to_ptr.vmem [resolvable:$true] %s323
          %329 = dma.hbm_to_vmem [thread:$0]  %s4, 1024, %s324, [#allocation11], 64, 64, 4
        $region16: #{tpu_custom_call.1} parent=11 // pred_fallthru
          _
        // Predicated region
        $region17: #{tpu_custom_call.1} parent=11 // pred_check
          %p330 = pneg %p150
        $region18: #{tpu_custom_call.1} parent=11 // pred_check_branch
          %332 = sbr.rel (%p330) target = $region20
        $region19: #{tpu_custom_call.1} parent=11 // pred_region
          _
        $region20: #{tpu_custom_call.1} parent=11 // pred_fallthru
          _
        // Predicated region
        $region21: #{tpu_custom_call.1} parent=11 // pred_check
          %p333 = pneg %p171
        $region22: #{tpu_custom_call.1} parent=11 // pred_check_branch
          %335 = sbr.rel (%p333) target = $region24
        $region23: #{tpu_custom_call.1} parent=11 // pred_region
          %s337 = ssub.s32 1024, 1024
          %338 = vsyncadd [#allocation11], %s337
          %s339 = sshll.u32 [#allocation12], 4
          %s340 = int_to_ptr.vmem [resolvable:$true] %s339
          %345 = dma.hbm_to_vmem [thread:$0]  %s6, 1024, %s340, [#allocation11], 64, 64, 4
        $region24: #{tpu_custom_call.1} parent=11 // pred_fallthru
          _
        // Predicated region
        $region25: #{tpu_custom_call.1} parent=11 // pred_check
          %p346 = pneg %p192
        $region26: #{tpu_custom_call.1} parent=11 // pred_check_branch
          %348 = sbr.rel (%p346) target = $region28
        $region27: #{tpu_custom_call.1} parent=11 // pred_region
          _
        $region28: #{tpu_custom_call.1} parent=11 // pred_fallthru
          _
        // Predicated region
        $region29: #{tpu_custom_call.1} parent=11 // pred_check
          %p349 = pneg %p213
        $region30: #{tpu_custom_call.1} parent=11 // pred_check_branch
          %351 = sbr.rel (%p349) target = $region32
        $region31: #{tpu_custom_call.1} parent=11 // pred_region
          %s353 = ssub.s32 1024, 1024
          %354 = vsyncadd [#allocation14], %s353
          %s355 = sshll.u32 [#allocation13], 4
          %s356 = int_to_ptr.vmem [resolvable:$true] %s355
          %361 = dma.hbm_to_vmem [thread:$0]  %s8, 1024, %s356, [#allocation14], 64, 64, 4
        $region32: #{tpu_custom_call.1} parent=11 // pred_fallthru
          _
        // Predicated region
        $region33: #{tpu_custom_call.1} parent=11 // pred_check
          %p362 = pneg %p234
        $region34: #{tpu_custom_call.1} parent=11 // pred_check_branch
          %364 = sbr.rel (%p362) target = $region36
        $region35: #{tpu_custom_call.1} parent=11 // pred_region
          _
        $region36: #{tpu_custom_call.1} parent=11 // pred_fallthru
          _
        // Predicated region
        $region37: #{tpu_custom_call.1} parent=11 // pred_check
          %p365 = pneg %p255
        $region38: #{tpu_custom_call.1} parent=11 // pred_check_branch
          %367 = sbr.rel (%p365) target = $region40
        $region39: #{tpu_custom_call.1} parent=11 // pred_region
          %s369 = ssub.s32 1024, 1024
          %370 = vsyncadd [#allocation14], %s369
          %s371 = sshll.u32 [#allocation15], 4
          %s372 = int_to_ptr.vmem [resolvable:$true] %s371
          %377 = dma.hbm_to_vmem [thread:$0]  %s10, 1024, %s372, [#allocation14], 64, 64, 4
        $region40: #{tpu_custom_call.1} parent=11 // pred_fallthru
          _
        // Predicated region
        $region41: #{tpu_custom_call.1} parent=11 // pred_check
          %p378 = pneg %p276
        $region42: #{tpu_custom_call.1} parent=11 // pred_check_branch
          %380 = sbr.rel (%p378) target = $region44
        $region43: #{tpu_custom_call.1} parent=11 // pred_region
          _
        $region44: #{tpu_custom_call.1} parent=11 // pred_fallthru
          _
      $region12: #{tpu_custom_call.1} parent=5 // pred_fallthru
        _
      %p381 = scmp.lt.s32.totalorder %s30, 2
      // Predicated region
      $region45: #{tpu_custom_call.1} parent=5 // pred_check
        %p382 = pneg %p381
      $region46: #{tpu_custom_call.1} parent=5 // pred_check_branch
        %384 = sbr.rel (%p382) target = $region48
      $region47: #{tpu_custom_call.1} parent=5 // pred_region
        // Predicated region
        $region49: #{tpu_custom_call.1} parent=47 // pred_check
          %p385 = pneg %p50
        $region50: #{tpu_custom_call.1} parent=47 // pred_check_branch
          %387 = sbr.rel (%p385) target = $region52
        $region51: #{tpu_custom_call.1} parent=47 // pred_region
          %s388 = sand.u32 %s40, 1
          %s389 = scalar_lea.sflag [#allocation5], %s388
          %s390 = sand.u32 %s40, 1
          %s391 = smul.addr %s390, 16
          %s392 = scalar_lea.vmem [#allocation4], %s391
          %s394 = ssub.s32 256, 256
          %395 = vsyncadd %s389, %s394
          %s396 = smul.addr %s30, 2
          %s397 = smul.addr %s396, 128
          %s398 = scalar_lea.hbm %s1, %s397
          %s399 = sshll.u32 %s392, 4
          %s400 = int_to_ptr.vmem [resolvable:$true] %s399
          %405 = dma.hbm_to_vmem [thread:$0]  %s398, 256, %s400, %s389, 128, 128, 8
        $region52: #{tpu_custom_call.1} parent=47 // pred_fallthru
          _
        // Predicated region
        $region53: #{tpu_custom_call.1} parent=47 // pred_check
          %p406 = pneg %p76
        $region54: #{tpu_custom_call.1} parent=47 // pred_check_branch
          %408 = sbr.rel (%p406) target = $region56
        $region55: #{tpu_custom_call.1} parent=47 // pred_region
          %s409 = sand.u32 %s30, 1
          %s410 = scalar_lea.sflag [#allocation8], %s409
          %s411 = sand.u32 %s66, 1
          %s412 = smul.addr %s411, 16
          %s413 = scalar_lea.vmem [#allocation7], %s412
          %s415 = ssub.s32 256, 256
          %416 = vsyncadd %s410, %s415
          %s417 = smul.addr %s30, 2
          %s418 = smul.addr %s417, 128
          %s419 = scalar_lea.hbm %s2, %s418
          %s420 = sshll.u32 %s413, 4
          %s421 = int_to_ptr.vmem [resolvable:$true] %s420
          %426 = dma.hbm_to_vmem [thread:$0]  %s419, 256, %s421, %s410, 128, 128, 8
        $region56: #{tpu_custom_call.1} parent=47 // pred_fallthru
          _
        // Predicated region
        $region57: #{tpu_custom_call.1} parent=47 // pred_check
          %p427 = pneg %p102
        $region58: #{tpu_custom_call.1} parent=47 // pred_check_branch
          %429 = sbr.rel (%p427) target = $region60
        $region59: #{tpu_custom_call.1} parent=47 // pred_region
          %s430 = sand.u32 %s30, 1
          %s431 = scalar_lea.sflag [#allocation8], %s430
          %s432 = sand.u32 %s92, 1
          %s433 = smul.addr %s432, 16
          %s434 = scalar_lea.vmem [#allocation9], %s433
          %s436 = ssub.s32 256, 256
          %437 = vsyncadd %s431, %s436
          %s438 = smul.addr %s30, 2
          %s439 = smul.addr %s438, 128
          %s440 = scalar_lea.hbm %s3, %s439
          %s441 = sshll.u32 %s434, 4
          %s442 = int_to_ptr.vmem [resolvable:$true] %s441
          %447 = dma.hbm_to_vmem [thread:$0]  %s440, 256, %s442, %s431, 128, 128, 8
        $region60: #{tpu_custom_call.1} parent=47 // pred_fallthru
          _
      $region48: #{tpu_custom_call.1} parent=5 // pred_fallthru
        _
      %p448 = scmp.le.s32.totalorder 1, %s30
      %p449 = scmp.lt.s32.totalorder %s30, 3
      %p450 = pnand %p448, %p449
      %p451 = pneg %p450
      // Predicated region
      $region61: #{tpu_custom_call.1} parent=5 // pred_check
        _
      $region62: #{tpu_custom_call.1} parent=5 // pred_check_branch
        %453 = sbr.rel (%p450) target = $region64
      $region63: #{tpu_custom_call.1} parent=5 // pred_region
        %s454 = ssub.s32 %s30, 1
        %s455 = sand.u32 %s43, 1
        %s456 = scalar_lea.sflag [#allocation5], %s455
        %s457 = sand.u32 %s43, 1
        %s458 = smul.addr %s457, 16
        %s459 = scalar_lea.vmem [#allocation4], %s458
        // Predicated region
        $region65: #{tpu_custom_call.1} parent=63 // pred_check
          %p460 = pneg %p56
        $region66: #{tpu_custom_call.1} parent=63 // pred_check_branch
          %462 = sbr.rel (%p460) target = $region68
        $region67: #{tpu_custom_call.1} parent=63 // pred_region
          %463 = dma.done %s456, 256
        $region68: #{tpu_custom_call.1} parent=63 // pred_fallthru
          _
        %s464 = sand.u32 %s35, 1
        %s465 = scalar_lea.sflag [#allocation8], %s464
        %s466 = sand.u32 %s69, 1
        %s467 = smul.addr %s466, 16
        %s468 = scalar_lea.vmem [#allocation7], %s467
        // Predicated region
        $region69: #{tpu_custom_call.1} parent=63 // pred_check
          %p469 = pneg %p82
        $region70: #{tpu_custom_call.1} parent=63 // pred_check_branch
          %471 = sbr.rel (%p469) target = $region72
        $region71: #{tpu_custom_call.1} parent=63 // pred_region
          %472 = dma.done %s465, 256
        $region72: #{tpu_custom_call.1} parent=63 // pred_fallthru
          _
        %s473 = sand.u32 %s35, 1
        %s474 = scalar_lea.sflag [#allocation8], %s473
        %s475 = sand.u32 %s95, 1
        %s476 = smul.addr %s475, 16
        %s477 = scalar_lea.vmem [#allocation9], %s476
        // Predicated region
        $region73: #{tpu_custom_call.1} parent=63 // pred_check
          %p478 = pneg %p108
        $region74: #{tpu_custom_call.1} parent=63 // pred_check_branch
          %480 = sbr.rel (%p478) target = $region76
        $region75: #{tpu_custom_call.1} parent=63 // pred_region
          %481 = dma.done %s474, 256
        $region76: #{tpu_custom_call.1} parent=63 // pred_fallthru
          _
        // Predicated region
        $region77: #{tpu_custom_call.1} parent=63 // pred_check
          %p482 = pneg %p129
        $region78: #{tpu_custom_call.1} parent=63 // pred_check_branch
          %484 = sbr.rel (%p482) target = $region80
        $region79: #{tpu_custom_call.1} parent=63 // pred_region
          %485 = dma.done [#allocation11], 1024
        $region80: #{tpu_custom_call.1} parent=63 // pred_fallthru
          _
        // Predicated region
        $region81: #{tpu_custom_call.1} parent=63 // pred_check
          %p486 = pneg %p171
        $region82: #{tpu_custom_call.1} parent=63 // pred_check_branch
          %488 = sbr.rel (%p486) target = $region84
        $region83: #{tpu_custom_call.1} parent=63 // pred_region
          %489 = dma.done [#allocation11], 1024
        $region84: #{tpu_custom_call.1} parent=63 // pred_fallthru
          _
        // Predicated region
        $region85: #{tpu_custom_call.1} parent=63 // pred_check
          %p490 = pneg %p213
        $region86: #{tpu_custom_call.1} parent=63 // pred_check_branch
          %492 = sbr.rel (%p490) target = $region88
        $region87: #{tpu_custom_call.1} parent=63 // pred_region
          %493 = dma.done [#allocation14], 1024
        $region88: #{tpu_custom_call.1} parent=63 // pred_fallthru
          _
        // Predicated region
        $region89: #{tpu_custom_call.1} parent=63 // pred_check
          %p494 = pneg %p255
        $region90: #{tpu_custom_call.1} parent=63 // pred_check_branch
          %496 = sbr.rel (%p494) target = $region92
        $region91: #{tpu_custom_call.1} parent=63 // pred_region
          %497 = dma.done [#allocation14], 1024
        $region92: #{tpu_custom_call.1} parent=63 // pred_fallthru
          _
        %s498 = sand.u32 %s43, 1
        %s499 = scalar_lea.sflag [#allocation5], %s498
        %s500 = sand.u32 %s43, 1
        %s501 = smul.addr %s500, 16
        %s502 = scalar_lea.vmem [#allocation4], %s501
        %p503 = pneg %p56
        %p504 = pneg %p53
        %s505 = sand.u32 %s35, 1
        %s506 = scalar_lea.sflag [#allocation8], %s505
        %s507 = sand.u32 %s69, 1
        %s508 = smul.addr %s507, 16
        %s509 = scalar_lea.vmem [#allocation7], %s508
        %p510 = pneg %p82
        %p511 = pneg %p79
        %s512 = sand.u32 %s35, 1
        %s513 = scalar_lea.sflag [#allocation8], %s512
        %s514 = sand.u32 %s95, 1
        %s515 = smul.addr %s514, 16
        %s516 = scalar_lea.vmem [#allocation9], %s515
        %p517 = pneg %p108
        %p518 = pneg %p105
        %p519 = pneg %p129
        %p520 = pneg %p126
        %p521 = pneg %p150
        %p522 = pneg %p147
        %p523 = pneg %p171
        %p524 = pneg %p168
        %p525 = pneg %p192
        %p526 = pneg %p189
        %p527 = pneg %p213
        %p528 = pneg %p210
        %p529 = pneg %p234
        %p530 = pneg %p231
        %p531 = pneg %p255
        %p532 = pneg %p252
        %p533 = pneg %p276
        %p534 = pneg %p273
        %p535 = pneg %p302
        %p536 = pneg %p299
        %s537 = sand.u32 %s289, 1
        %s538 = scalar_lea.sflag [#allocation6], %s537
        %s539 = sand.u32 %s289, 1
        %s540 = smul.addr %s539, 16
        %s541 = scalar_lea.vmem [#allocation16], %s540
        %v543 = vld [vmem:[%s459] sm:$0xff]
        %v544 = vld [vmem:[%s459 + $0x8] sm:$0xff]
        %v545 = vpack.c.bf16 %v544, %v543
        %v546 = vld [vmem:[%s468] sm:$0xff]
        %v547 = vld [vmem:[%s468 + $0x8] sm:$0xff]
        %v548 = vpack.c.bf16 %v547, %v546
        %v549 = vld [vmem:[%s477] sm:$0xff]
        %v550 = vld [vmem:[%s477 + $0x8] sm:$0xff]
        %v551 = vpack.c.bf16 %v550, %v549
        %v552 = vld [vmem:[#allocation10] sm:$0xf]
        %v553 = vld [vmem:[#allocation10 + $0x4] sm:$0xf]
        %v554 = vld [vmem:[#allocation10 + $0x8] sm:$0xf]
        %v555 = vld [vmem:[#allocation10 + $0xc] sm:$0xf]
        %v556 = vld [vmem:[#allocation10 + $0x10] sm:$0xf]
        %v557 = vld [vmem:[#allocation10 + $0x14] sm:$0xf]
        %v558 = vld [vmem:[#allocation10 + $0x18] sm:$0xf]
        %v559 = vld [vmem:[#allocation10 + $0x1c] sm:$0xf]
        %v560 = vld [vmem:[#allocation10 + $0x20] sm:$0xf]
        %v561 = vld [vmem:[#allocation10 + $0x24] sm:$0xf]
        %v562 = vld [vmem:[#allocation10 + $0x28] sm:$0xf]
        %v563 = vld [vmem:[#allocation10 + $0x2c] sm:$0xf]
        %v564 = vld [vmem:[#allocation10 + $0x30] sm:$0xf]
        %v565 = vld [vmem:[#allocation10 + $0x34] sm:$0xf]
        %v566 = vld [vmem:[#allocation10 + $0x38] sm:$0xf]
        %v567 = vld [vmem:[#allocation10 + $0x3c] sm:$0xf]
        %v568 = vld [vmem:[%s5] sm:$0x1]
        %v570 = vlaneseq
        %v571 = vshrl.u32 %v570, 7
        %v572 = vsub.s32 0, %v571
        %v573 = vrot.slane %v568, %v572
        %v591 = vunpack.c.l.b16 %v552
        %v592 = vunpack.c.l.b16 %v553
        %v593 = vunpack.c.l.b16 %v554
        %v594 = vunpack.c.l.b16 %v555
        %v595 = vunpack.c.l.b16 %v556
        %v596 = vunpack.c.l.b16 %v557
        %v597 = vunpack.c.l.b16 %v558
        %v598 = vunpack.c.l.b16 %v559
        %v599 = vunpack.c.l.b16 %v560
        %v600 = vunpack.c.l.b16 %v561
        %v601 = vunpack.c.l.b16 %v562
        %v602 = vunpack.c.l.b16 %v563
        %v603 = vunpack.c.l.b16 %v564
        %v604 = vunpack.c.l.b16 %v565
        %v605 = vunpack.c.l.b16 %v566
        %v606 = vunpack.c.l.b16 %v567
        %v607 = vpack.c.b16 %v592, %v591
        %v608 = vpack.c.b16 %v594, %v593
        %v609 = vpack.c.b16 %v596, %v595
        %v610 = vpack.c.b16 %v598, %v597
        %v611 = vpack.c.b16 %v600, %v599
        %v612 = vpack.c.b16 %v602, %v601
        %v613 = vpack.c.b16 %v604, %v603
        %v614 = vpack.c.b16 %v606, %v605
        %623 = vmatprep.subr.bf16.mxu0 0
        %624 = vmatpush1.bf16.msra.mxu0 %v614
        %625 = vmatprep.subr.bf16.mxu0 0
        %626 = vmatpush1.bf16.msra.mxu0 %v613
        %627 = vmatprep.subr.bf16.mxu0 0
        %628 = vmatpush1.bf16.msra.mxu0 %v612
        %629 = vmatprep.subr.bf16.mxu0 0
        %630 = vmatpush1.bf16.msra.mxu0 %v611
        %631 = vmatprep.subr.bf16.mxu0 0
        %632 = vmatpush1.bf16.msra.mxu0 %v610
        %633 = vmatprep.subr.bf16.mxu0 0
        %634 = vmatpush1.bf16.msra.mxu0 %v609
        %635 = vmatprep.subr.bf16.mxu0 0
        %636 = vmatpush1.bf16.msra.mxu0 %v608
        %637 = vmatprep.subr.bf16.mxu0 0
        %638 = vmatpush1.bf16.msra.mxu0 %v607
        %639 = vmatprep.subr.bf16.mxu0 0
        %640 = vmatpush2.bf16.msra.mxu0 0
        %641 = vmatprep.subr.bf16.mxu0 0
        %642 = vmatpush2.bf16.msra.mxu0 0
        %643 = vmatprep.subr.bf16.mxu0 0
        %644 = vmatpush2.bf16.msra.mxu0 0
        %645 = vmatprep.subr.bf16.mxu0 0
        %646 = vmatpush2.bf16.msra.mxu0 0
        %647 = vmatprep.subr.bf16.mxu0 0
        %648 = vmatpush2.bf16.msra.mxu0 0
        %649 = vmatprep.subr.bf16.mxu0 0
        %650 = vmatpush2.bf16.msra.mxu0 0
        %651 = vmatprep.subr.bf16.mxu0 0
        %652 = vmatpush2.bf16.msra.mxu0 0
        %653 = vmatprep.subr.bf16.mxu0 0
        %654 = vmatpush2.bf16.msra.mxu0 0
        %655 = vmatprep.mubr.bf16.mxu0 0
        %656 = vmatmul.mubr.bf16.gmra.mxu0 %v545
        %v657 = vpop.f32.mrf.mxu0
        %v658 = vadd.f32 %v573, %v657
        %v659 = vpop.f32.mrf.mxu0
        %v660 = vpop.f32.mrf.mxu0
        %v661 = vadd.f32 %v573, %v660
        %v662 = vpop.f32.mrf.mxu0
        %663 = vdwg.mxu0
        %v664 = vld [vmem:[#allocation12] sm:$0xf]
        %v665 = vld [vmem:[#allocation12 + $0x4] sm:$0xf]
        %v666 = vld [vmem:[#allocation12 + $0x8] sm:$0xf]
        %v667 = vld [vmem:[#allocation12 + $0xc] sm:$0xf]
        %v668 = vld [vmem:[#allocation12 + $0x10] sm:$0xf]
        %v669 = vld [vmem:[#allocation12 + $0x14] sm:$0xf]
        %v670 = vld [vmem:[#allocation12 + $0x18] sm:$0xf]
        %v671 = vld [vmem:[#allocation12 + $0x1c] sm:$0xf]
        %v672 = vld [vmem:[#allocation12 + $0x20] sm:$0xf]
        %v673 = vld [vmem:[#allocation12 + $0x24] sm:$0xf]
        %v674 = vld [vmem:[#allocation12 + $0x28] sm:$0xf]
        %v675 = vld [vmem:[#allocation12 + $0x2c] sm:$0xf]
        %v676 = vld [vmem:[#allocation12 + $0x30] sm:$0xf]
        %v677 = vld [vmem:[#allocation12 + $0x34] sm:$0xf]
        %v678 = vld [vmem:[#allocation12 + $0x38] sm:$0xf]
        %v679 = vld [vmem:[#allocation12 + $0x3c] sm:$0xf]
        %v680 = vld [vmem:[%s7] sm:$0x1]
        %v682 = vlaneseq
        %v683 = vshrl.u32 %v682, 7
        %v684 = vsub.s32 0, %v683
        %v685 = vrot.slane %v680, %v684
        %v703 = vunpack.c.l.b16 %v664
        %v704 = vunpack.c.l.b16 %v665
        %v705 = vunpack.c.l.b16 %v666
        %v706 = vunpack.c.l.b16 %v667
        %v707 = vunpack.c.l.b16 %v668
        %v708 = vunpack.c.l.b16 %v669
        %v709 = vunpack.c.l.b16 %v670
        %v710 = vunpack.c.l.b16 %v671
        %v711 = vunpack.c.l.b16 %v672
        %v712 = vunpack.c.l.b16 %v673
        %v713 = vunpack.c.l.b16 %v674
        %v714 = vunpack.c.l.b16 %v675
        %v715 = vunpack.c.l.b16 %v676
        %v716 = vunpack.c.l.b16 %v677
        %v717 = vunpack.c.l.b16 %v678
        %v718 = vunpack.c.l.b16 %v679
        %v719 = vpack.c.b16 %v704, %v703
        %v720 = vpack.c.b16 %v706, %v705
        %v721 = vpack.c.b16 %v708, %v707
        %v722 = vpack.c.b16 %v710, %v709
        %v723 = vpack.c.b16 %v712, %v711
        %v724 = vpack.c.b16 %v714, %v713
        %v725 = vpack.c.b16 %v716, %v715
        %v726 = vpack.c.b16 %v718, %v717
        %735 = vmatprep.subr.bf16.mxu0 0
        %736 = vmatpush1.bf16.msra.mxu0 %v726
        %737 = vmatprep.subr.bf16.mxu0 0
        %738 = vmatpush1.bf16.msra.mxu0 %v725
        %739 = vmatprep.subr.bf16.mxu0 0
        %740 = vmatpush1.bf16.msra.mxu0 %v724
        %741 = vmatprep.subr.bf16.mxu0 0
        %742 = vmatpush1.bf16.msra.mxu0 %v723
        %743 = vmatprep.subr.bf16.mxu0 0
        %744 = vmatpush1.bf16.msra.mxu0 %v722
        %745 = vmatprep.subr.bf16.mxu0 0
        %746 = vmatpush1.bf16.msra.mxu0 %v721
        %747 = vmatprep.subr.bf16.mxu0 0
        %748 = vmatpush1.bf16.msra.mxu0 %v720
        %749 = vmatprep.subr.bf16.mxu0 0
        %750 = vmatpush1.bf16.msra.mxu0 %v719
        %751 = vmatprep.subr.bf16.mxu0 0
        %752 = vmatpush2.bf16.msra.mxu0 0
        %753 = vmatprep.subr.bf16.mxu0 0
        %754 = vmatpush2.bf16.msra.mxu0 0
        %755 = vmatprep.subr.bf16.mxu0 0
        %756 = vmatpush2.bf16.msra.mxu0 0
        %757 = vmatprep.subr.bf16.mxu0 0
        %758 = vmatpush2.bf16.msra.mxu0 0
        %759 = vmatprep.subr.bf16.mxu0 0
        %760 = vmatpush2.bf16.msra.mxu0 0
        %761 = vmatprep.subr.bf16.mxu0 0
        %762 = vmatpush2.bf16.msra.mxu0 0
        %763 = vmatprep.subr.bf16.mxu0 0
        %764 = vmatpush2.bf16.msra.mxu0 0
        %765 = vmatprep.subr.bf16.mxu0 0
        %766 = vmatpush2.bf16.msra.mxu0 0
        %767 = vmatprep.mubr.bf16.mxu0 0
        %768 = vmatmul.mubr.bf16.gmra.mxu0 %v548
        %v769 = vpop.f32.mrf.mxu0
        %v770 = vadd.f32 %v685, %v769
        %v771 = vpop.f32.mrf.mxu0
        %v772 = vpop.f32.mrf.mxu0
        %v773 = vadd.f32 %v685, %v772
        %v774 = vpop.f32.mrf.mxu0
        %775 = vdwg.mxu0
        %v776 = vld [vmem:[#allocation13] sm:$0xf]
        %v777 = vld [vmem:[#allocation13 + $0x4] sm:$0xf]
        %v778 = vld [vmem:[#allocation13 + $0x8] sm:$0xf]
        %v779 = vld [vmem:[#allocation13 + $0xc] sm:$0xf]
        %v780 = vld [vmem:[#allocation13 + $0x10] sm:$0xf]
        %v781 = vld [vmem:[#allocation13 + $0x14] sm:$0xf]
        %v782 = vld [vmem:[#allocation13 + $0x18] sm:$0xf]
        %v783 = vld [vmem:[#allocation13 + $0x1c] sm:$0xf]
        %v784 = vld [vmem:[#allocation13 + $0x20] sm:$0xf]
        %v785 = vld [vmem:[#allocation13 + $0x24] sm:$0xf]
        %v786 = vld [vmem:[#allocation13 + $0x28] sm:$0xf]
        %v787 = vld [vmem:[#allocation13 + $0x2c] sm:$0xf]
        %v788 = vld [vmem:[#allocation13 + $0x30] sm:$0xf]
        %v789 = vld [vmem:[#allocation13 + $0x34] sm:$0xf]
        %v790 = vld [vmem:[#allocation13 + $0x38] sm:$0xf]
        %v791 = vld [vmem:[#allocation13 + $0x3c] sm:$0xf]
        %v792 = vld [vmem:[%s9] sm:$0x1]
        %v794 = vlaneseq
        %v795 = vshrl.u32 %v794, 7
        %v796 = vsub.s32 0, %v795
        %v797 = vrot.slane %v792, %v796
        %v815 = vunpack.c.l.b16 %v776
        %v816 = vunpack.c.l.b16 %v777
        %v817 = vunpack.c.l.b16 %v778
        %v818 = vunpack.c.l.b16 %v779
        %v819 = vunpack.c.l.b16 %v780
        %v820 = vunpack.c.l.b16 %v781
        %v821 = vunpack.c.l.b16 %v782
        %v822 = vunpack.c.l.b16 %v783
        %v823 = vunpack.c.l.b16 %v784
        %v824 = vunpack.c.l.b16 %v785
        %v825 = vunpack.c.l.b16 %v786
        %v826 = vunpack.c.l.b16 %v787
        %v827 = vunpack.c.l.b16 %v788
        %v828 = vunpack.c.l.b16 %v789
        %v829 = vunpack.c.l.b16 %v790
        %v830 = vunpack.c.l.b16 %v791
        %v831 = vpack.c.b16 %v816, %v815
        %v832 = vpack.c.b16 %v818, %v817
        %v833 = vpack.c.b16 %v820, %v819
        %v834 = vpack.c.b16 %v822, %v821
        %v835 = vpack.c.b16 %v824, %v823
        %v836 = vpack.c.b16 %v826, %v825
        %v837 = vpack.c.b16 %v828, %v827
        %v838 = vpack.c.b16 %v830, %v829
        %847 = vmatprep.subr.bf16.mxu0 0
        %848 = vmatpush1.bf16.msra.mxu0 %v838
        %849 = vmatprep.subr.bf16.mxu0 0
        %850 = vmatpush1.bf16.msra.mxu0 %v837
        %851 = vmatprep.subr.bf16.mxu0 0
        %852 = vmatpush1.bf16.msra.mxu0 %v836
        %853 = vmatprep.subr.bf16.mxu0 0
        %854 = vmatpush1.bf16.msra.mxu0 %v835
        %855 = vmatprep.subr.bf16.mxu0 0
        %856 = vmatpush1.bf16.msra.mxu0 %v834
        %857 = vmatprep.subr.bf16.mxu0 0
        %858 = vmatpush1.bf16.msra.mxu0 %v833
        %859 = vmatprep.subr.bf16.mxu0 0
        %860 = vmatpush1.bf16.msra.mxu0 %v832
        %861 = vmatprep.subr.bf16.mxu0 0
        %862 = vmatpush1.bf16.msra.mxu0 %v831
        %863 = vmatprep.subr.bf16.mxu0 0
        %864 = vmatpush2.bf16.msra.mxu0 0
        %865 = vmatprep.subr.bf16.mxu0 0
        %866 = vmatpush2.bf16.msra.mxu0 0
        %867 = vmatprep.subr.bf16.mxu0 0
        %868 = vmatpush2.bf16.msra.mxu0 0
        %869 = vmatprep.subr.bf16.mxu0 0
        %870 = vmatpush2.bf16.msra.mxu0 0
        %871 = vmatprep.subr.bf16.mxu0 0
        %872 = vmatpush2.bf16.msra.mxu0 0
        %873 = vmatprep.subr.bf16.mxu0 0
        %874 = vmatpush2.bf16.msra.mxu0 0
        %875 = vmatprep.subr.bf16.mxu0 0
        %876 = vmatpush2.bf16.msra.mxu0 0
        %877 = vmatprep.subr.bf16.mxu0 0
        %878 = vmatpush2.bf16.msra.mxu0 0
        %879 = vmatprep.mubr.bf16.mxu0 0
        %880 = vmatmul.mubr.bf16.gmra.mxu0 %v551
        %v881 = vpop.f32.mrf.mxu0
        %v882 = vadd.f32 %v797, %v881
        %v883 = vpop.f32.mrf.mxu0
        %v884 = vpop.f32.mrf.mxu0
        %v885 = vadd.f32 %v797, %v884
        %v886 = vpop.f32.mrf.mxu0
        %887 = vdwg.mxu0
        %v888 = vmul.f32 %v658, 0.17677669
        %v889 = vmul.f32 %v661, 0.17677669
        %v890 = vpack.c.bf16 %v889, %v888
        %v891 = vpack.c.bf16 %v773, %v770
        %v892 = vpack.c.bf16 %v885, %v882
        %v893 = vld [vmem:[#allocation15] sm:$0xf]
        %v894 = vld [vmem:[#allocation15 + $0x4] sm:$0xf]
        %v895 = vld [vmem:[#allocation15 + $0x8] sm:$0xf]
        %v896 = vld [vmem:[#allocation15 + $0xc] sm:$0xf]
        %v897 = vld [vmem:[#allocation15 + $0x10] sm:$0xf]
        %v898 = vld [vmem:[#allocation15 + $0x14] sm:$0xf]
        %v899 = vld [vmem:[#allocation15 + $0x18] sm:$0xf]
        %v900 = vld [vmem:[#allocation15 + $0x1c] sm:$0xf]
        %v901 = vld [vmem:[#allocation15 + $0x20] sm:$0xf]
        %v902 = vld [vmem:[#allocation15 + $0x24] sm:$0xf]
        %v903 = vld [vmem:[#allocation15 + $0x28] sm:$0xf]
        %v904 = vld [vmem:[#allocation15 + $0x2c] sm:$0xf]
        %v905 = vld [vmem:[#allocation15 + $0x30] sm:$0xf]
        %v906 = vld [vmem:[#allocation15 + $0x34] sm:$0xf]
        %v907 = vld [vmem:[#allocation15 + $0x38] sm:$0xf]
        %v908 = vld [vmem:[#allocation15 + $0x3c] sm:$0xf]
        %vm909 = vcmask 261120
        %v911 = vsel %vm909, %v890, 0
        %v914 = vsel %vm909, %v891, 0
        %916 = vmatprep.subr.bf16.mxu0 0
        %917 = vmatpush1.bf16.xpose.msra.mxu0 0
        %918 = vmatprep.subr.bf16.mxu0 0
        %919 = vmatpush1.bf16.xpose.msra.mxu0 0
        %920 = vmatprep.subr.bf16.mxu0 0
        %921 = vmatpush1.bf16.xpose.msra.mxu0 0
        %922 = vmatprep.subr.bf16.mxu0 0
        %923 = vmatpush1.bf16.xpose.msra.mxu0 0
        %924 = vmatprep.subr.bf16.mxu0 0
        %925 = vmatpush1.bf16.xpose.msra.mxu0 0
        %926 = vmatprep.subr.bf16.mxu0 0
        %927 = vmatpush1.bf16.xpose.msra.mxu0 0
        %928 = vmatprep.subr.bf16.mxu0 0
        %929 = vmatpush1.bf16.xpose.msra.mxu0 0
        %930 = vmatprep.subr.bf16.mxu0 0
        %931 = vmatpush1.bf16.xpose.msra.mxu0 %v914
        %932 = vmatprep.subr.bf16.mxu0 0
        %933 = vmatpush2.bf16.xpose.msra.mxu0 0
        %934 = vmatprep.subr.bf16.mxu0 0
        %935 = vmatpush2.bf16.xpose.msra.mxu0 0
        %936 = vmatprep.subr.bf16.mxu0 0
        %937 = vmatpush2.bf16.xpose.msra.mxu0 0
        %938 = vmatprep.subr.bf16.mxu0 0
        %939 = vmatpush2.bf16.xpose.msra.mxu0 0
        %940 = vmatprep.subr.bf16.mxu0 0
        %941 = vmatpush2.bf16.xpose.msra.mxu0 0
        %942 = vmatprep.subr.bf16.mxu0 0
        %943 = vmatpush2.bf16.xpose.msra.mxu0 0
        %944 = vmatprep.subr.bf16.mxu0 0
        %945 = vmatpush2.bf16.xpose.msra.mxu0 0
        %946 = vmatprep.subr.bf16.mxu0 0
        %947 = vmatpush2.bf16.xpose.msra.mxu0 0
        %948 = vmatprep.mubr.bf16.mxu0 0
        %949 = vmatmul.mubr.bf16.gmra.mxu0 %v911
        %v950 = vpop.f32.mrf.mxu0
        %v951 = vadd.f32 0.0, %v950
        %v952 = vpop.f32.mrf.mxu0
        %v953 = vpop.f32.mrf.mxu0
        %v954 = vadd.f32 0.0, %v953
        %v955 = vpop.f32.mrf.mxu0
        %956 = vdwg.mxu0
        %vm957 = vcmask 130048
        %v958 = vsel %vm957, %v951, -inf
        %959 = vmax.xlane.f32.xlu0 %v958
        %v960 = vpop.xlane.xlu0 %959
        %v961 = vsel %vm957, %v954, -inf
        %962 = vmax.xlane.f32.xlu0 %v961
        %v963 = vpop.xlane.xlu0 %962
        %v964 = vsub.f32 %v951, %v960
        %v965 = vsub.f32 %v954, %v963
        %v966 = vmul.f32 %v964, 1.442695
        %v967 = vpow.pop %v966
        %v968 = vmul.f32 %v965, 1.442695
        %v969 = vpow.pop %v968
        %v970 = vsel %vm957, %v967, 0.0
        %971 = vadd.xlane.f32.xlu0 %v970
        %v972 = vpop.xlane.xlu0 %971
        %v973 = vsel %vm957, %v969, 0.0
        %974 = vadd.xlane.f32.xlu0 %v973
        %v975 = vpop.xlane.xlu0 %974
        %v976 = vrcp.pop %v972
        %v977 = vrcp.pop %v975
        %v978 = vmul.f32 %v967, %v976
        %v979 = vmul.f32 %v969, %v977
        %v980 = vpack.c.bf16 %v979, %v978
        %v982 = vsel %vm957, %v980, 0
        %984 = vmatprep.subr.bf16.mxu0 0
        %985 = vmatpush1.bf16.msra.mxu0 0
        %986 = vmatprep.subr.bf16.mxu0 0
        %987 = vmatpush1.bf16.msra.mxu0 0
        %988 = vmatprep.subr.bf16.mxu0 0
        %989 = vmatpush1.bf16.msra.mxu0 0
        %990 = vmatprep.subr.bf16.mxu0 0
        %991 = vmatpush1.bf16.msra.mxu0 0
        %992 = vmatprep.subr.bf16.mxu0 0
        %993 = vmatpush1.bf16.msra.mxu0 0
        %994 = vmatprep.subr.bf16.mxu0 0
        %995 = vmatpush1.bf16.msra.mxu0 0
        %996 = vmatprep.subr.bf16.mxu0 0
        %997 = vmatpush1.bf16.msra.mxu0 0
        %998 = vmatprep.subr.bf16.mxu0 0
        %999 = vmatpush1.bf16.msra.mxu0 %v892
        %1000 = vmatprep.subr.bf16.mxu0 0
        %1001 = vmatpush2.bf16.msra.mxu0 0
        %1002 = vmatprep.subr.bf16.mxu0 0
        %1003 = vmatpush2.bf16.msra.mxu0 0
        %1004 = vmatprep.subr.bf16.mxu0 0
        %1005 = vmatpush2.bf16.msra.mxu0 0
        %1006 = vmatprep.subr.bf16.mxu0 0
        %1007 = vmatpush2.bf16.msra.mxu0 0
        %1008 = vmatprep.subr.bf16.mxu0 0
        %1009 = vmatpush2.bf16.msra.mxu0 0
        %1010 = vmatprep.subr.bf16.mxu0 0
        %1011 = vmatpush2.bf16.msra.mxu0 0
        %1012 = vmatprep.subr.bf16.mxu0 0
        %1013 = vmatpush2.bf16.msra.mxu0 0
        %1014 = vmatprep.subr.bf16.mxu0 0
        %1015 = vmatpush2.bf16.msra.mxu0 0
        %1016 = vmatprep.mubr.bf16.mxu0 0
        %1017 = vmatmul.mubr.bf16.gmra.mxu0 %v982
        %v1018 = vpop.f32.mrf.mxu0
        %v1019 = vadd.f32 0.0, %v1018
        %v1020 = vpop.f32.mrf.mxu0
        %v1021 = vpop.f32.mrf.mxu0
        %v1022 = vadd.f32 0.0, %v1021
        %v1023 = vpop.f32.mrf.mxu0
        %1024 = vdwg.mxu0
        %v1025 = vpack.c.bf16 %v1022, %v1019
        %1027 = vrot.lane.b32.xlu0 %v890, 96
        %v1028 = vpop.permute.xlu0 %1027
        %1030 = vrot.lane.b32.xlu0 %v891, 96
        %v1031 = vpop.permute.xlu0 %1030
        %v1033 = vsel %vm909, %v1028, 0
        %v1036 = vsel %vm909, %v1031, 0
        %1038 = vmatprep.subr.bf16.mxu0 0
        %1039 = vmatpush1.bf16.xpose.msra.mxu0 0
        %1040 = vmatprep.subr.bf16.mxu0 0
        %1041 = vmatpush1.bf16.xpose.msra.mxu0 0
        %1042 = vmatprep.subr.bf16.mxu0 0
        %1043 = vmatpush1.bf16.xpose.msra.mxu0 0
        %1044 = vmatprep.subr.bf16.mxu0 0
        %1045 = vmatpush1.bf16.xpose.msra.mxu0 0
        %1046 = vmatprep.subr.bf16.mxu0 0
        %1047 = vmatpush1.bf16.xpose.msra.mxu0 0
        %1048 = vmatprep.subr.bf16.mxu0 0
        %1049 = vmatpush1.bf16.xpose.msra.mxu0 0
        %1050 = vmatprep.subr.bf16.mxu0 0
        %1051 = vmatpush1.bf16.xpose.msra.mxu0 0
        %1052 = vmatprep.subr.bf16.mxu0 0
        %1053 = vmatpush1.bf16.xpose.msra.mxu0 %v1036
        %1054 = vmatprep.subr.bf16.mxu0 0
        %1055 = vmatpush2.bf16.xpose.msra.mxu0 0
        %1056 = vmatprep.subr.bf16.mxu0 0
        %1057 = vmatpush2.bf16.xpose.msra.mxu0 0
        %1058 = vmatprep.subr.bf16.mxu0 0
        %1059 = vmatpush2.bf16.xpose.msra.mxu0 0
        %1060 = vmatprep.subr.bf16.mxu0 0
        %1061 = vmatpush2.bf16.xpose.msra.mxu0 0
        %1062 = vmatprep.subr.bf16.mxu0 0
        %1063 = vmatpush2.bf16.xpose.msra.mxu0 0
        %1064 = vmatprep.subr.bf16.mxu0 0
        %1065 = vmatpush2.bf16.xpose.msra.mxu0 0
        %1066 = vmatprep.subr.bf16.mxu0 0
        %1067 = vmatpush2.bf16.xpose.msra.mxu0 0
        %1068 = vmatprep.subr.bf16.mxu0 0
        %1069 = vmatpush2.bf16.xpose.msra.mxu0 0
        %1070 = vmatprep.mubr.bf16.mxu0 0
        %1071 = vmatmul.mubr.bf16.gmra.mxu0 %v1033
        %v1072 = vpop.f32.mrf.mxu0
        %v1073 = vadd.f32 0.0, %v1072
        %v1074 = vpop.f32.mrf.mxu0
        %v1075 = vpop.f32.mrf.mxu0
        %v1076 = vadd.f32 0.0, %v1075
        %v1077 = vpop.f32.mrf.mxu0
        %1078 = vdwg.mxu0
        %v1079 = vsel %vm957, %v1073, -inf
        %1080 = vmax.xlane.f32.xlu0 %v1079
        %v1081 = vpop.xlane.xlu0 %1080
        %v1082 = vsel %vm957, %v1076, -inf
        %1083 = vmax.xlane.f32.xlu0 %v1082
        %v1084 = vpop.xlane.xlu0 %1083
        %v1085 = vsub.f32 %v1073, %v1081
        %v1086 = vsub.f32 %v1076, %v1084
        %v1087 = vmul.f32 %v1085, 1.442695
        %v1088 = vpow.pop %v1087
        %v1089 = vmul.f32 %v1086, 1.442695
        %v1090 = vpow.pop %v1089
        %v1091 = vsel %vm957, %v1088, 0.0
        %1092 = vadd.xlane.f32.xlu0 %v1091
        %v1093 = vpop.xlane.xlu0 %1092
        %v1094 = vsel %vm957, %v1090, 0.0
        %1095 = vadd.xlane.f32.xlu0 %v1094
        %v1096 = vpop.xlane.xlu0 %1095
        %v1097 = vrcp.pop %v1093
        %v1098 = vrcp.pop %v1096
        %v1099 = vmul.f32 %v1088, %v1097
        %v1100 = vmul.f32 %v1090, %v1098
        %v1101 = vpack.c.bf16 %v1100, %v1099
        %1103 = vrot.lane.b32.xlu0 %v892, 96
        %v1104 = vpop.permute.xlu0 %1103
        %v1107 = vsel %vm957, %v1101, 0
        %1109 = vmatprep.subr.bf16.mxu0 0
        %1110 = vmatpush1.bf16.msra.mxu0 0
        %1111 = vmatprep.subr.bf16.mxu0 0
        %1112 = vmatpush1.bf16.msra.mxu0 0
        %1113 = vmatprep.subr.bf16.mxu0 0
        %1114 = vmatpush1.bf16.msra.mxu0 0
        %1115 = vmatprep.subr.bf16.mxu0 0
        %1116 = vmatpush1.bf16.msra.mxu0 0
        %1117 = vmatprep.subr.bf16.mxu0 0
        %1118 = vmatpush1.bf16.msra.mxu0 0
        %1119 = vmatprep.subr.bf16.mxu0 0
        %1120 = vmatpush1.bf16.msra.mxu0 0
        %1121 = vmatprep.subr.bf16.mxu0 0
        %1122 = vmatpush1.bf16.msra.mxu0 0
        %1123 = vmatprep.subr.bf16.mxu0 0
        %1124 = vmatpush1.bf16.msra.mxu0 %v1104
        %1125 = vmatprep.subr.bf16.mxu0 0
        %1126 = vmatpush2.bf16.msra.mxu0 0
        %1127 = vmatprep.subr.bf16.mxu0 0
        %1128 = vmatpush2.bf16.msra.mxu0 0
        %1129 = vmatprep.subr.bf16.mxu0 0
        %1130 = vmatpush2.bf16.msra.mxu0 0
        %1131 = vmatprep.subr.bf16.mxu0 0
        %1132 = vmatpush2.bf16.msra.mxu0 0
        %1133 = vmatprep.subr.bf16.mxu0 0
        %1134 = vmatpush2.bf16.msra.mxu0 0
        %1135 = vmatprep.subr.bf16.mxu0 0
        %1136 = vmatpush2.bf16.msra.mxu0 0
        %1137 = vmatprep.subr.bf16.mxu0 0
        %1138 = vmatpush2.bf16.msra.mxu0 0
        %1139 = vmatprep.subr.bf16.mxu0 0
        %1140 = vmatpush2.bf16.msra.mxu0 0
        %1141 = vmatprep.mubr.bf16.mxu0 0
        %1142 = vmatmul.mubr.bf16.gmra.mxu0 %v1107
        %v1143 = vpop.f32.mrf.mxu0
        %v1144 = vadd.f32 0.0, %v1143
        %v1145 = vpop.f32.mrf.mxu0
        %v1146 = vpop.f32.mrf.mxu0
        %v1147 = vadd.f32 0.0, %v1146
        %v1148 = vpop.f32.mrf.mxu0
        %1149 = vdwg.mxu0
        %v1150 = vpack.c.bf16 %v1147, %v1144
        %v1155 = vunpack.c.l.b16 %v897
        %v1156 = vunpack.c.l.b16 %v898
        %v1157 = vunpack.c.l.b16 %v899
        %v1158 = vunpack.c.l.b16 %v900
        %v1159 = vpack.c.b16 %v1156, %v1155
        %v1160 = vpack.c.b16 %v1158, %v1157
        %v1164 = vsel %vm909, %v1150, 0
        %1166 = vmatprep.subr.bf16.mxu0 0
        %1167 = vmatpush1.bf16.msra.mxu0 0
        %1168 = vmatprep.subr.bf16.mxu0 0
        %1169 = vmatpush1.bf16.msra.mxu0 0
        %1170 = vmatprep.subr.bf16.mxu0 0
        %1171 = vmatpush1.bf16.msra.mxu0 0
        %1172 = vmatprep.subr.bf16.mxu0 0
        %1173 = vmatpush1.bf16.msra.mxu0 0
        %1174 = vmatprep.subr.bf16.mxu0 0
        %1175 = vmatpush1.bf16.msra.mxu0 0
        %1176 = vmatprep.subr.bf16.mxu0 0
        %1177 = vmatpush1.bf16.msra.mxu0 0
        %1178 = vmatprep.subr.bf16.mxu0 0
        %1179 = vmatpush1.bf16.msra.mxu0 %v1160
        %1180 = vmatprep.subr.bf16.mxu0 0
        %1181 = vmatpush1.bf16.msra.mxu0 %v1159
        %1182 = vmatprep.subr.bf16.mxu0 0
        %1183 = vmatpush2.bf16.msra.mxu0 0
        %1184 = vmatprep.subr.bf16.mxu0 0
        %1185 = vmatpush2.bf16.msra.mxu0 0
        %1186 = vmatprep.subr.bf16.mxu0 0
        %1187 = vmatpush2.bf16.msra.mxu0 0
        %1188 = vmatprep.subr.bf16.mxu0 0
        %1189 = vmatpush2.bf16.msra.mxu0 0
        %1190 = vmatprep.subr.bf16.mxu0 0
        %1191 = vmatpush2.bf16.msra.mxu0 0
        %1192 = vmatprep.subr.bf16.mxu0 0
        %1193 = vmatpush2.bf16.msra.mxu0 0
        %1194 = vmatprep.subr.bf16.mxu0 0
        %1195 = vmatpush2.bf16.msra.mxu0 0
        %1196 = vmatprep.subr.bf16.mxu0 0
        %1197 = vmatpush2.bf16.msra.mxu0 0
        %1198 = vmatprep.mubr.bf16.mxu0 0
        %1199 = vmatmul.mubr.bf16.gmra.mxu0 %v1164
        %v1200 = vpop.f32.mrf.mxu0
        %v1201 = vadd.f32 0.0, %v1200
        %v1202 = vpop.f32.mrf.mxu0
        %v1203 = vpop.f32.mrf.mxu0
        %v1204 = vadd.f32 0.0, %v1203
        %v1205 = vpop.f32.mrf.mxu0
        %1206 = vdwg.mxu0
        %v1211 = vunpack.c.l.b16 %v893
        %v1212 = vunpack.c.l.b16 %v894
        %v1213 = vunpack.c.l.b16 %v895
        %v1214 = vunpack.c.l.b16 %v896
        %v1215 = vpack.c.b16 %v1212, %v1211
        %v1216 = vpack.c.b16 %v1214, %v1213
        %v1220 = vsel %vm909, %v1025, 0
        %1222 = vmatprep.subr.bf16.mxu0 0
        %1223 = vmatpush1.bf16.msra.mxu0 0
        %1224 = vmatprep.subr.bf16.mxu0 0
        %1225 = vmatpush1.bf16.msra.mxu0 0
        %1226 = vmatprep.subr.bf16.mxu0 0
        %1227 = vmatpush1.bf16.msra.mxu0 0
        %1228 = vmatprep.subr.bf16.mxu0 0
        %1229 = vmatpush1.bf16.msra.mxu0 0
        %1230 = vmatprep.subr.bf16.mxu0 0
        %1231 = vmatpush1.bf16.msra.mxu0 0
        %1232 = vmatprep.subr.bf16.mxu0 0
        %1233 = vmatpush1.bf16.msra.mxu0 0
        %1234 = vmatprep.subr.bf16.mxu0 0
        %1235 = vmatpush1.bf16.msra.mxu0 %v1216
        %1236 = vmatprep.subr.bf16.mxu0 0
        %1237 = vmatpush1.bf16.msra.mxu0 %v1215
        %1238 = vmatprep.subr.bf16.mxu0 0
        %1239 = vmatpush2.bf16.msra.mxu0 0
        %1240 = vmatprep.subr.bf16.mxu0 0
        %1241 = vmatpush2.bf16.msra.mxu0 0
        %1242 = vmatprep.subr.bf16.mxu0 0
        %1243 = vmatpush2.bf16.msra.mxu0 0
        %1244 = vmatprep.subr.bf16.mxu0 0
        %1245 = vmatpush2.bf16.msra.mxu0 0
        %1246 = vmatprep.subr.bf16.mxu0 0
        %1247 = vmatpush2.bf16.msra.mxu0 0
        %1248 = vmatprep.subr.bf16.mxu0 0
        %1249 = vmatpush2.bf16.msra.mxu0 0
        %1250 = vmatprep.subr.bf16.mxu0 0
        %1251 = vmatpush2.bf16.msra.mxu0 0
        %1252 = vmatprep.subr.bf16.mxu0 0
        %1253 = vmatpush2.bf16.msra.mxu0 0
        %1254 = vmatprep.mubr.bf16.mxu0 0
        %1255 = vmatmul.mubr.bf16.gmra.mxu0 %v1220
        %v1256 = vpop.f32.mrf.mxu0
        %v1257 = vadd.f32 %v1201, %v1256
        %v1258 = vpop.f32.mrf.mxu0
        %v1259 = vpop.f32.mrf.mxu0
        %v1260 = vadd.f32 %v1204, %v1259
        %v1261 = vpop.f32.mrf.mxu0
        %1262 = vdwg.mxu0
        %1263 = vrot.lane.b32.xlu0 %v890, 64
        %v1264 = vpop.permute.xlu0 %1263
        %1265 = vrot.lane.b32.xlu0 %v891, 64
        %v1266 = vpop.permute.xlu0 %1265
        %v1268 = vsel %vm909, %v1264, 0
        %v1271 = vsel %vm909, %v1266, 0
        %1273 = vmatprep.subr.bf16.mxu0 0
        %1274 = vmatpush1.bf16.xpose.msra.mxu0 0
        %1275 = vmatprep.subr.bf16.mxu0 0
        %1276 = vmatpush1.bf16.xpose.msra.mxu0 0
        %1277 = vmatprep.subr.bf16.mxu0 0
        %1278 = vmatpush1.bf16.xpose.msra.mxu0 0
        %1279 = vmatprep.subr.bf16.mxu0 0
        %1280 = vmatpush1.bf16.xpose.msra.mxu0 0
        %1281 = vmatprep.subr.bf16.mxu0 0
        %1282 = vmatpush1.bf16.xpose.msra.mxu0 0
        %1283 = vmatprep.subr.bf16.mxu0 0
        %1284 = vmatpush1.bf16.xpose.msra.mxu0 0
        %1285 = vmatprep.subr.bf16.mxu0 0
        %1286 = vmatpush1.bf16.xpose.msra.mxu0 0
        %1287 = vmatprep.subr.bf16.mxu0 0
        %1288 = vmatpush1.bf16.xpose.msra.mxu0 %v1271
        %1289 = vmatprep.subr.bf16.mxu0 0
        %1290 = vmatpush2.bf16.xpose.msra.mxu0 0
        %1291 = vmatprep.subr.bf16.mxu0 0
        %1292 = vmatpush2.bf16.xpose.msra.mxu0 0
        %1293 = vmatprep.subr.bf16.mxu0 0
        %1294 = vmatpush2.bf16.xpose.msra.mxu0 0
        %1295 = vmatprep.subr.bf16.mxu0 0
        %1296 = vmatpush2.bf16.xpose.msra.mxu0 0
        %1297 = vmatprep.subr.bf16.mxu0 0
        %1298 = vmatpush2.bf16.xpose.msra.mxu0 0
        %1299 = vmatprep.subr.bf16.mxu0 0
        %1300 = vmatpush2.bf16.xpose.msra.mxu0 0
        %1301 = vmatprep.subr.bf16.mxu0 0
        %1302 = vmatpush2.bf16.xpose.msra.mxu0 0
        %1303 = vmatprep.subr.bf16.mxu0 0
        %1304 = vmatpush2.bf16.xpose.msra.mxu0 0
        %1305 = vmatprep.mubr.bf16.mxu0 0
        %1306 = vmatmul.mubr.bf16.gmra.mxu0 %v1268
        %v1307 = vpop.f32.mrf.mxu0
        %v1308 = vadd.f32 0.0, %v1307
        %v1309 = vpop.f32.mrf.mxu0
        %v1310 = vpop.f32.mrf.mxu0
        %v1311 = vadd.f32 0.0, %v1310
        %v1312 = vpop.f32.mrf.mxu0
        %1313 = vdwg.mxu0
        %v1314 = vsel %vm957, %v1308, -inf
        %1315 = vmax.xlane.f32.xlu0 %v1314
        %v1316 = vpop.xlane.xlu0 %1315
        %v1317 = vsel %vm957, %v1311, -inf
        %1318 = vmax.xlane.f32.xlu0 %v1317
        %v1319 = vpop.xlane.xlu0 %1318
        %v1320 = vsub.f32 %v1308, %v1316
        %v1321 = vsub.f32 %v1311, %v1319
        %v1322 = vmul.f32 %v1320, 1.442695
        %v1323 = vpow.pop %v1322
        %v1324 = vmul.f32 %v1321, 1.442695
        %v1325 = vpow.pop %v1324
        %v1326 = vsel %vm957, %v1323, 0.0
        %1327 = vadd.xlane.f32.xlu0 %v1326
        %v1328 = vpop.xlane.xlu0 %1327
        %v1329 = vsel %vm957, %v1325, 0.0
        %1330 = vadd.xlane.f32.xlu0 %v1329
        %v1331 = vpop.xlane.xlu0 %1330
        %v1332 = vrcp.pop %v1328
        %v1333 = vrcp.pop %v1331
        %v1334 = vmul.f32 %v1323, %v1332
        %v1335 = vmul.f32 %v1325, %v1333
        %v1336 = vpack.c.bf16 %v1335, %v1334
        %1337 = vrot.lane.b32.xlu0 %v892, 64
        %v1338 = vpop.permute.xlu0 %1337
        %v1341 = vsel %vm957, %v1336, 0
        %1343 = vmatprep.subr.bf16.mxu0 0
        %1344 = vmatpush1.bf16.msra.mxu0 0
        %1345 = vmatprep.subr.bf16.mxu0 0
        %1346 = vmatpush1.bf16.msra.mxu0 0
        %1347 = vmatprep.subr.bf16.mxu0 0
        %1348 = vmatpush1.bf16.msra.mxu0 0
        %1349 = vmatprep.subr.bf16.mxu0 0
        %1350 = vmatpush1.bf16.msra.mxu0 0
        %1351 = vmatprep.subr.bf16.mxu0 0
        %1352 = vmatpush1.bf16.msra.mxu0 0
        %1353 = vmatprep.subr.bf16.mxu0 0
        %1354 = vmatpush1.bf16.msra.mxu0 0
        %1355 = vmatprep.subr.bf16.mxu0 0
        %1356 = vmatpush1.bf16.msra.mxu0 0
        %1357 = vmatprep.subr.bf16.mxu0 0
        %1358 = vmatpush1.bf16.msra.mxu0 %v1338
        %1359 = vmatprep.subr.bf16.mxu0 0
        %1360 = vmatpush2.bf16.msra.mxu0 0
        %1361 = vmatprep.subr.bf16.mxu0 0
        %1362 = vmatpush2.bf16.msra.mxu0 0
        %1363 = vmatprep.subr.bf16.mxu0 0
        %1364 = vmatpush2.bf16.msra.mxu0 0
        %1365 = vmatprep.subr.bf16.mxu0 0
        %1366 = vmatpush2.bf16.msra.mxu0 0
        %1367 = vmatprep.subr.bf16.mxu0 0
        %1368 = vmatpush2.bf16.msra.mxu0 0
        %1369 = vmatprep.subr.bf16.mxu0 0
        %1370 = vmatpush2.bf16.msra.mxu0 0
        %1371 = vmatprep.subr.bf16.mxu0 0
        %1372 = vmatpush2.bf16.msra.mxu0 0
        %1373 = vmatprep.subr.bf16.mxu0 0
        %1374 = vmatpush2.bf16.msra.mxu0 0
        %1375 = vmatprep.mubr.bf16.mxu0 0
        %1376 = vmatmul.mubr.bf16.gmra.mxu0 %v1341
        %v1377 = vpop.f32.mrf.mxu0
        %v1378 = vadd.f32 0.0, %v1377
        %v1379 = vpop.f32.mrf.mxu0
        %v1380 = vpop.f32.mrf.mxu0
        %v1381 = vadd.f32 0.0, %v1380
        %v1382 = vpop.f32.mrf.mxu0
        %1383 = vdwg.mxu0
        %v1384 = vpack.c.bf16 %v1381, %v1378
        %v1389 = vunpack.c.l.b16 %v901
        %v1390 = vunpack.c.l.b16 %v902
        %v1391 = vunpack.c.l.b16 %v903
        %v1392 = vunpack.c.l.b16 %v904
        %v1393 = vpack.c.b16 %v1390, %v1389
        %v1394 = vpack.c.b16 %v1392, %v1391
        %v1398 = vsel %vm909, %v1384, 0
        %1400 = vmatprep.subr.bf16.mxu0 0
        %1401 = vmatpush1.bf16.msra.mxu0 0
        %1402 = vmatprep.subr.bf16.mxu0 0
        %1403 = vmatpush1.bf16.msra.mxu0 0
        %1404 = vmatprep.subr.bf16.mxu0 0
        %1405 = vmatpush1.bf16.msra.mxu0 0
        %1406 = vmatprep.subr.bf16.mxu0 0
        %1407 = vmatpush1.bf16.msra.mxu0 0
        %1408 = vmatprep.subr.bf16.mxu0 0
        %1409 = vmatpush1.bf16.msra.mxu0 0
        %1410 = vmatprep.subr.bf16.mxu0 0
        %1411 = vmatpush1.bf16.msra.mxu0 0
        %1412 = vmatprep.subr.bf16.mxu0 0
        %1413 = vmatpush1.bf16.msra.mxu0 %v1394
        %1414 = vmatprep.subr.bf16.mxu0 0
        %1415 = vmatpush1.bf16.msra.mxu0 %v1393
        %1416 = vmatprep.subr.bf16.mxu0 0
        %1417 = vmatpush2.bf16.msra.mxu0 0
        %1418 = vmatprep.subr.bf16.mxu0 0
        %1419 = vmatpush2.bf16.msra.mxu0 0
        %1420 = vmatprep.subr.bf16.mxu0 0
        %1421 = vmatpush2.bf16.msra.mxu0 0
        %1422 = vmatprep.subr.bf16.mxu0 0
        %1423 = vmatpush2.bf16.msra.mxu0 0
        %1424 = vmatprep.subr.bf16.mxu0 0
        %1425 = vmatpush2.bf16.msra.mxu0 0
        %1426 = vmatprep.subr.bf16.mxu0 0
        %1427 = vmatpush2.bf16.msra.mxu0 0
        %1428 = vmatprep.subr.bf16.mxu0 0
        %1429 = vmatpush2.bf16.msra.mxu0 0
        %1430 = vmatprep.subr.bf16.mxu0 0
        %1431 = vmatpush2.bf16.msra.mxu0 0
        %1432 = vmatprep.mubr.bf16.mxu0 0
        %1433 = vmatmul.mubr.bf16.gmra.mxu0 %v1398
        %v1434 = vpop.f32.mrf.mxu0
        %v1435 = vadd.f32 0.0, %v1434
        %v1436 = vpop.f32.mrf.mxu0
        %v1437 = vpop.f32.mrf.mxu0
        %v1438 = vadd.f32 0.0, %v1437
        %v1439 = vpop.f32.mrf.mxu0
        %1440 = vdwg.mxu0
        %v1441 = vadd.f32 %v1257, %v1435
        %v1442 = vadd.f32 %v1260, %v1438
        %1443 = vrot.lane.b32.xlu0 %v890, 32
        %v1444 = vpop.permute.xlu0 %1443
        %1445 = vrot.lane.b32.xlu0 %v891, 32
        %v1446 = vpop.permute.xlu0 %1445
        %v1448 = vsel %vm909, %v1444, 0
        %v1451 = vsel %vm909, %v1446, 0
        %1453 = vmatprep.subr.bf16.mxu0 0
        %1454 = vmatpush1.bf16.xpose.msra.mxu0 0
        %1455 = vmatprep.subr.bf16.mxu0 0
        %1456 = vmatpush1.bf16.xpose.msra.mxu0 0
        %1457 = vmatprep.subr.bf16.mxu0 0
        %1458 = vmatpush1.bf16.xpose.msra.mxu0 0
        %1459 = vmatprep.subr.bf16.mxu0 0
        %1460 = vmatpush1.bf16.xpose.msra.mxu0 0
        %1461 = vmatprep.subr.bf16.mxu0 0
        %1462 = vmatpush1.bf16.xpose.msra.mxu0 0
        %1463 = vmatprep.subr.bf16.mxu0 0
        %1464 = vmatpush1.bf16.xpose.msra.mxu0 0
        %1465 = vmatprep.subr.bf16.mxu0 0
        %1466 = vmatpush1.bf16.xpose.msra.mxu0 0
        %1467 = vmatprep.subr.bf16.mxu0 0
        %1468 = vmatpush1.bf16.xpose.msra.mxu0 %v1451
        %1469 = vmatprep.subr.bf16.mxu0 0
        %1470 = vmatpush2.bf16.xpose.msra.mxu0 0
        %1471 = vmatprep.subr.bf16.mxu0 0
        %1472 = vmatpush2.bf16.xpose.msra.mxu0 0
        %1473 = vmatprep.subr.bf16.mxu0 0
        %1474 = vmatpush2.bf16.xpose.msra.mxu0 0
        %1475 = vmatprep.subr.bf16.mxu0 0
        %1476 = vmatpush2.bf16.xpose.msra.mxu0 0
        %1477 = vmatprep.subr.bf16.mxu0 0
        %1478 = vmatpush2.bf16.xpose.msra.mxu0 0
        %1479 = vmatprep.subr.bf16.mxu0 0
        %1480 = vmatpush2.bf16.xpose.msra.mxu0 0
        %1481 = vmatprep.subr.bf16.mxu0 0
        %1482 = vmatpush2.bf16.xpose.msra.mxu0 0
        %1483 = vmatprep.subr.bf16.mxu0 0
        %1484 = vmatpush2.bf16.xpose.msra.mxu0 0
        %1485 = vmatprep.mubr.bf16.mxu0 0
        %1486 = vmatmul.mubr.bf16.gmra.mxu0 %v1448
        %v1487 = vpop.f32.mrf.mxu0
        %v1488 = vadd.f32 0.0, %v1487
        %v1489 = vpop.f32.mrf.mxu0
        %v1490 = vpop.f32.mrf.mxu0
        %v1491 = vadd.f32 0.0, %v1490
        %v1492 = vpop.f32.mrf.mxu0
        %1493 = vdwg.mxu0
        %v1494 = vsel %vm957, %v1488, -inf
        %1495 = vmax.xlane.f32.xlu0 %v1494
        %v1496 = vpop.xlane.xlu0 %1495
        %v1497 = vsel %vm957, %v1491, -inf
        %1498 = vmax.xlane.f32.xlu0 %v1497
        %v1499 = vpop.xlane.xlu0 %1498
        %v1500 = vsub.f32 %v1488, %v1496
        %v1501 = vsub.f32 %v1491, %v1499
        %v1502 = vmul.f32 %v1500, 1.442695
        %v1503 = vpow.pop %v1502
        %v1504 = vmul.f32 %v1501, 1.442695
        %v1505 = vpow.pop %v1504
        %v1506 = vsel %vm957, %v1503, 0.0
        %1507 = vadd.xlane.f32.xlu0 %v1506
        %v1508 = vpop.xlane.xlu0 %1507
        %v1509 = vsel %vm957, %v1505, 0.0
        %1510 = vadd.xlane.f32.xlu0 %v1509
        %v1511 = vpop.xlane.xlu0 %1510
        %v1512 = vrcp.pop %v1508
        %v1513 = vrcp.pop %v1511
        %v1514 = vmul.f32 %v1503, %v1512
        %v1515 = vmul.f32 %v1505, %v1513
        %v1516 = vpack.c.bf16 %v1515, %v1514
        %1517 = vrot.lane.b32.xlu0 %v892, 32
        %v1518 = vpop.permute.xlu0 %1517
        %v1521 = vsel %vm957, %v1516, 0
        %1523 = vmatprep.subr.bf16.mxu0 0
        %1524 = vmatpush1.bf16.msra.mxu0 0
        %1525 = vmatprep.subr.bf16.mxu0 0
        %1526 = vmatpush1.bf16.msra.mxu0 0
        %1527 = vmatprep.subr.bf16.mxu0 0
        %1528 = vmatpush1.bf16.msra.mxu0 0
        %1529 = vmatprep.subr.bf16.mxu0 0
        %1530 = vmatpush1.bf16.msra.mxu0 0
        %1531 = vmatprep.subr.bf16.mxu0 0
        %1532 = vmatpush1.bf16.msra.mxu0 0
        %1533 = vmatprep.subr.bf16.mxu0 0
        %1534 = vmatpush1.bf16.msra.mxu0 0
        %1535 = vmatprep.subr.bf16.mxu0 0
        %1536 = vmatpush1.bf16.msra.mxu0 0
        %1537 = vmatprep.subr.bf16.mxu0 0
        %1538 = vmatpush1.bf16.msra.mxu0 %v1518
        %1539 = vmatprep.subr.bf16.mxu0 0
        %1540 = vmatpush2.bf16.msra.mxu0 0
        %1541 = vmatprep.subr.bf16.mxu0 0
        %1542 = vmatpush2.bf16.msra.mxu0 0
        %1543 = vmatprep.subr.bf16.mxu0 0
        %1544 = vmatpush2.bf16.msra.mxu0 0
        %1545 = vmatprep.subr.bf16.mxu0 0
        %1546 = vmatpush2.bf16.msra.mxu0 0
        %1547 = vmatprep.subr.bf16.mxu0 0
        %1548 = vmatpush2.bf16.msra.mxu0 0
        %1549 = vmatprep.subr.bf16.mxu0 0
        %1550 = vmatpush2.bf16.msra.mxu0 0
        %1551 = vmatprep.subr.bf16.mxu0 0
        %1552 = vmatpush2.bf16.msra.mxu0 0
        %1553 = vmatprep.subr.bf16.mxu0 0
        %1554 = vmatpush2.bf16.msra.mxu0 0
        %1555 = vmatprep.mubr.bf16.mxu0 0
        %1556 = vmatmul.mubr.bf16.gmra.mxu0 %v1521
        %v1557 = vpop.f32.mrf.mxu0
        %v1558 = vadd.f32 0.0, %v1557
        %v1559 = vpop.f32.mrf.mxu0
        %v1560 = vpop.f32.mrf.mxu0
        %v1561 = vadd.f32 0.0, %v1560
        %v1562 = vpop.f32.mrf.mxu0
        %1563 = vdwg.mxu0
        %v1564 = vpack.c.bf16 %v1561, %v1558
        %v1569 = vunpack.c.l.b16 %v905
        %v1570 = vunpack.c.l.b16 %v906
        %v1571 = vunpack.c.l.b16 %v907
        %v1572 = vunpack.c.l.b16 %v908
        %v1573 = vpack.c.b16 %v1570, %v1569
        %v1574 = vpack.c.b16 %v1572, %v1571
        %v1578 = vsel %vm909, %v1564, 0
        %1580 = vmatprep.subr.bf16.mxu0 0
        %1581 = vmatpush1.bf16.msra.mxu0 0
        %1582 = vmatprep.subr.bf16.mxu0 0
        %1583 = vmatpush1.bf16.msra.mxu0 0
        %1584 = vmatprep.subr.bf16.mxu0 0
        %1585 = vmatpush1.bf16.msra.mxu0 0
        %1586 = vmatprep.subr.bf16.mxu0 0
        %1587 = vmatpush1.bf16.msra.mxu0 0
        %1588 = vmatprep.subr.bf16.mxu0 0
        %1589 = vmatpush1.bf16.msra.mxu0 0
        %1590 = vmatprep.subr.bf16.mxu0 0
        %1591 = vmatpush1.bf16.msra.mxu0 0
        %1592 = vmatprep.subr.bf16.mxu0 0
        %1593 = vmatpush1.bf16.msra.mxu0 %v1574
        %1594 = vmatprep.subr.bf16.mxu0 0
        %1595 = vmatpush1.bf16.msra.mxu0 %v1573
        %1596 = vmatprep.subr.bf16.mxu0 0
        %1597 = vmatpush2.bf16.msra.mxu0 0
        %1598 = vmatprep.subr.bf16.mxu0 0
        %1599 = vmatpush2.bf16.msra.mxu0 0
        %1600 = vmatprep.subr.bf16.mxu0 0
        %1601 = vmatpush2.bf16.msra.mxu0 0
        %1602 = vmatprep.subr.bf16.mxu0 0
        %1603 = vmatpush2.bf16.msra.mxu0 0
        %1604 = vmatprep.subr.bf16.mxu0 0
        %1605 = vmatpush2.bf16.msra.mxu0 0
        %1606 = vmatprep.subr.bf16.mxu0 0
        %1607 = vmatpush2.bf16.msra.mxu0 0
        %1608 = vmatprep.subr.bf16.mxu0 0
        %1609 = vmatpush2.bf16.msra.mxu0 0
        %1610 = vmatprep.subr.bf16.mxu0 0
        %1611 = vmatpush2.bf16.msra.mxu0 0
        %1612 = vmatprep.mubr.bf16.mxu0 0
        %1613 = vmatmul.mubr.bf16.gmra.mxu0 %v1578
        %v1614 = vpop.f32.mrf.mxu0
        %v1615 = vadd.f32 0.0, %v1614
        %v1616 = vpop.f32.mrf.mxu0
        %v1617 = vpop.f32.mrf.mxu0
        %v1618 = vadd.f32 0.0, %v1617
        %v1619 = vpop.f32.mrf.mxu0
        %1620 = vdwg.mxu0
        %v1621 = vadd.f32 %v1441, %v1615
        %v1622 = vadd.f32 %v1442, %v1618
        %v1623 = vld [vmem:[%s11] sm:$0x1]
        %v1625 = vlaneseq
        %v1626 = vshrl.u32 %v1625, 7
        %v1627 = vsub.s32 0, %v1626
        %v1628 = vrot.slane %v1623, %v1627
        %v1630 = vadd.f32 %v1621, %v1628
        %v1631 = vadd.f32 %v1622, %v1628
        %1632 = vst [vmem:[%s541] sm:$0xff] %v1630
        %1633 = vst [vmem:[%s541 + $0x8] sm:$0xff] %v1631
        %s1634 = sand.u32 %s289, 1
        %s1635 = scalar_lea.sflag [#allocation6], %s1634
        %s1636 = sand.u32 %s289, 1
        %s1637 = smul.addr %s1636, 16
        %s1638 = scalar_lea.vmem [#allocation16], %s1637
        // Predicated region
        $region93: #{tpu_custom_call.1} parent=63 // pred_check
          %p1639 = pneg %p299
        $region94: #{tpu_custom_call.1} parent=63 // pred_check_branch
          %1641 = sbr.rel (%p1639) target = $region96
        $region95: #{tpu_custom_call.1} parent=63 // pred_region
          %s1643 = ssub.s32 256, 256
          %1644 = vsyncadd %s1635, %s1643
          %s1645 = smul.addr %s35, 2
          %s1646 = smul.addr %s1645, 128
          %s1647 = scalar_lea.hbm %s12, %s1646
          %s1648 = sshll.u32 %s1638, 4
          %s1649 = int_to_ptr.vmem [resolvable:$true] %s1648
          %1654 = dma.vmem_to_hbm [thread:$0]  %s1649, 256, %s1647, %s1635, 128, 128, 8
        $region96: #{tpu_custom_call.1} parent=63 // pred_fallthru
          _
      $region64: #{tpu_custom_call.1} parent=5 // pred_fallthru
        _
      %p1655 = scmp.le.s32.totalorder 2, %s30
      // Predicated region
      $region97: #{tpu_custom_call.1} parent=5 // pred_check
        %p1656 = pneg %p1655
      $region98: #{tpu_custom_call.1} parent=5 // pred_check_branch
        %1658 = sbr.rel (%p1656) target = $region100
      $region99: #{tpu_custom_call.1} parent=5 // pred_region
        %s1659 = ssub.s32 %s30, 2
        // Predicated region
        $region101: #{tpu_custom_call.1} parent=99 // pred_check
          %p1660 = pneg %p305
        $region102: #{tpu_custom_call.1} parent=99 // pred_check_branch
          %1662 = sbr.rel (%p1660) target = $region104
        $region103: #{tpu_custom_call.1} parent=99 // pred_region
          %s1663 = sand.u32 %s290, 1
          %s1664 = scalar_lea.sflag [#allocation6], %s1663
          %s1665 = sand.u32 %s290, 1
          %s1666 = smul.addr %s1665, 16
          %s1667 = scalar_lea.vmem [#allocation16], %s1666
          %1668 = dma.done %s1664, 256
        $region104: #{tpu_custom_call.1} parent=99 // pred_fallthru
          _
      $region100: #{tpu_custom_call.1} parent=5 // pred_fallthru
        _
    $region6: #{tpu_custom_call.1} parent=1 // loop_footer
      %s34 = sadd.s32 1, %s30
    $region7: #{tpu_custom_call.1} parent=1 // loop_footer_branch
      %29 = sbr.rel target = $region3
    $region8: #{tpu_custom_call.1} parent=1 // loop_exit
      _
    %1669 = vsyncpa [#allocation5], 1
    %s1670 = scalar_lea.sflag [#allocation5], 1
    %1671 = vsyncpa %s1670, 1
    %1672 = vsyncpa [#allocation8], 1
    %s1673 = scalar_lea.sflag [#allocation8], 1
    %1674 = vsyncpa %s1673, 1
    %1675 = vsyncpa [#allocation11], 1
    %1676 = vsyncpa [#allocation14], 1
    %1677 = vsyncpa [#allocation6], 1
    %s1678 = scalar_lea.sflag [#allocation6], 1
    %1679 = vsyncpa %s1678, 1

</llo_original>
